<compile_context>
chip_gen: v7x
topology: tpu7x:2x2x1
jax: 0.10.0
libtpu: 0.0.40
codegen_flags: <defaults>
</compile_context>

<pallas_src>
import functools
import math

import jax
import jax.numpy as jnp
from jax.experimental import pallas as pl
from jax.experimental.pallas import tpu as pltpu

LN_EPS = 1e-5


def _layer_norm(x, gamma, beta):
    # x: (N, D) f32, gamma/beta: (1, D) f32
    mean = jnp.mean(x, axis=-1, keepdims=True)
    var = jnp.mean((x - mean) ** 2, axis=-1, keepdims=True)
    return (x - mean) * jax.lax.rsqrt(var + LN_EPS) * gamma + beta


def _cross_attn_block_kernel(
    # inputs: one (batch, q-tile) block per grid step
    dec_ref, enc_ref,
    # multi-head attention params (fused layouts)
    wq_ref, bq_ref, wkv_ref, bkv_ref, wo_ref, bo_ref,
    # residual-1 layernorm params
    ln1_g_ref, ln1_b_ref,
    # FFNN params (hidden-chunked layouts)
    w1_ref, b1_ref, w2_ref, b2_ref,
    # residual-2 layernorm params
    ln2_g_ref, ln2_b_ref,
    # output
    out_ref,
    # scratch: per-batch projected K|V, computed once per batch
    kv_ref,
    *, num_heads, ffn_chunks, compute_dtype):

    # --- K/V projection, once per batch (the q axis iterates innermost and is
    # marked "arbitrary"; the scratch persists across its steps). ---
    @pl.when(pl.program_id(1) == 0)
    def _():
        enc_c = enc_ref[0]                                   # (Ne, D) compute_dtype
        kv = jnp.dot(enc_c, wkv_ref[...],
                     preferred_element_type=jnp.float32) + bkv_ref[...]
        kv_ref[...] = kv.astype(compute_dtype)               # (Ne, 2D)

    dec_f32 = dec_ref[0].astype(jnp.float32)                 # (tq, D) residual path
    dec_c = dec_f32.astype(compute_dtype)                    # (tq, D) MXU path
    tq, D = dec_f32.shape
    dh = D // num_heads

    # --- Q projection: single full-width GEMM; 1/sqrt(dh) is folded into
    # wq/bq host-side. ---
    q = jnp.dot(dec_c, wq_ref[...],
                preferred_element_type=jnp.float32) + bq_ref[...]      # (tq, D)
    q_c = q.astype(compute_dtype)

    # --- Per-head attention.  Heads read contiguous lane slices of Q and the
    # K/V scratch; outputs are concatenated on the lane dim and pushed through
    # one fused W_o GEMM. ---
    head_outs = []
    for h in range(num_heads):  # static unroll (small H); see module TODO
        qh = q_c[:, h * dh:(h + 1) * dh]                     # (tq, dh)
        kh = kv_ref[:, h * dh:(h + 1) * dh]                  # (Ne, dh)
        vh = kv_ref[:, D + h * dh:D + (h + 1) * dh]          # (Ne, dh)

        # scores: contract head dim of both operands -> (tq, Ne)
        s = jax.lax.dot_general(qh, kh, (((1,), (1,)), ((), ())),
                                preferred_element_type=jnp.float32)
        s = s - jnp.max(s, axis=-1, keepdims=True)
        p = jnp.exp(s)
        p = p * pl.reciprocal(jnp.sum(p, axis=-1, keepdims=True), approx=True)

        oh = jnp.dot(p.astype(compute_dtype), vh,
                     preferred_element_type=jnp.float32)     # (tq, dh)
        head_outs.append(oh.astype(compute_dtype))

    heads = jnp.concatenate(head_outs, axis=-1)              # (tq, D) lane-dense
    attn = jnp.dot(heads, wo_ref[...],
                   preferred_element_type=jnp.float32) + bo_ref[...]

    # --- Residual 1: LayerNorm(decoder_input + dropout(attention_output)) ---
    res1 = _layer_norm(dec_f32 + attn, ln1_g_ref[...], ln1_b_ref[...])
    res1_c = res1.astype(compute_dtype)

    # --- FFNN: Linear(D,4D) -> ReLU -> dropout -> Linear(4D,D), tiled over
    # the hidden dimension so only one (tq, chunk) slab is live at a time. ---
    ffn = jnp.zeros_like(res1)
    for c in range(ffn_chunks):  # static unroll; chunks on leading weight axis
        hid = jnp.dot(res1_c, w1_ref[c],
                      preferred_element_type=jnp.float32) + b1_ref[c]
        hid = jnp.maximum(hid, 0.0).astype(compute_dtype)
        ffn += jnp.dot(hid, w2_ref[c], preferred_element_type=jnp.float32)
    ffn = ffn + b2_ref[...]

    # --- Residual 2: LayerNorm(res1 + dropout(ffn)) ---
    out = _layer_norm(res1 + ffn, ln2_g_ref[...], ln2_b_ref[...])
    out_ref[0] = out.astype(out_ref.dtype)


def _largest_divisor_leq(n, cap):
    cap = max(1, min(int(cap), int(n)))
    for d in range(cap, 0, -1):
        if n % d == 0:
            return d
    return n


def prepare_weights(params, num_heads, *, ffn_chunk, compute_dtype):
    """Host-side weight re-layout (fused projections, chunked FFN).

    Callers should do this once per parameter set (e.g. cache it / run under
    jit) rather than per forward call.
    """
    D = params["wq"].shape[0]
    d_ff = params["w1"].shape[-1]
    dh = D // num_heads
    scale = 1.0 / math.sqrt(dh)
    f32 = jnp.float32

    chunk = _largest_divisor_leq(d_ff, ffn_chunk)
    n_c = d_ff // chunk

    # Q projection with 1/sqrt(dh) folded in.
    wq = (params["wq"] * scale).astype(compute_dtype)                  # (D, D)
    bq = (params["bq"] * scale).astype(f32)                            # (1, D)
    # Fused K|V projection.
    wkv = jnp.concatenate([params["wk"], params["wv"]], axis=1).astype(compute_dtype)  # (D, 2D)
    bkv = jnp.concatenate([params["bk"], params["bv"]], axis=1).astype(f32)            # (1, 2D)
    wo = params["wo"].astype(compute_dtype)                            # (D, D)
    bo = params["bo"].astype(f32)                                      # (1, D)

    w1 = jnp.transpose(params["w1"].reshape(D, n_c, chunk), (1, 0, 2)).astype(compute_dtype)
    b1 = params["b1"].reshape(n_c, 1, chunk).astype(f32)
    w2 = params["w2"].reshape(n_c, chunk, D).astype(compute_dtype)
    b2 = params["b2"].astype(f32)

    ln1_g = params["ln1_g"].astype(f32)
    ln1_b = params["ln1_b"].astype(f32)
    ln2_g = params["ln2_g"].astype(f32)
    ln2_b = params["ln2_b"].astype(f32)

    weights = [wq, bq, wkv, bkv, wo, bo,
               ln1_g, ln1_b, w1, b1, w2, b2, ln2_g, ln2_b]
    return weights, chunk, n_c


def cross_attention_block(decoder_input, encoder_output, params, num_heads,
                          *, block_q=None, ffn_chunk=2048,
                          compute_dtype=jnp.bfloat16):
    B, Nd, D = decoder_input.shape
    _, Ne, _ = encoder_output.shape
    assert D % num_heads == 0, "D_embed must be divisible by N_heads"

    # ---- Device-aware sizing ----
    try:
        info = pltpu.get_tpu_info()
        device_vmem = int(getattr(info, "vmem_capacity_bytes", 128 << 20))
    except Exception:  # e.g. interpret mode / no TPU info available
        device_vmem = 128 << 20
    if block_q is None:
        # Bigger tiles amortize per-grid-step overhead on 128 MiB parts
        # (v5e/v6e); keep smaller on 64 MiB (v7x).
        block_q = 256 if device_vmem > (64 << 20) else 128

    # Decoder-sequence tiling (second grid axis): largest divisor <= block_q
    # so we never collapse to a single full-Nd tile.
    tq = _largest_divisor_leq(Nd, block_q)
    n_q = Nd // tq

    # ---- Host-side weight re-layout ----
    weights, chunk, n_c = prepare_weights(
        params, num_heads, ffn_chunk=ffn_chunk, compute_dtype=compute_dtype)

    # Encoder is only consumed on the MXU path -> cast once at the boundary
    # (halves its DMA bytes / double-buffer VMEM).  Decoder stays f32 for the
    # residual / LayerNorm path.
    encoder_c = encoder_output.astype(compute_dtype)

    # ---- BlockSpecs ----
    in_specs = [
        pl.BlockSpec((1, tq, D), lambda b, q: (b, q, 0)),   # decoder tile
        pl.BlockSpec((1, Ne, D), lambda b, q: (b, 0, 0)),   # encoder (per batch)
    ]
    for w in weights:
        in_specs.append(pl.BlockSpec(w.shape, lambda b, q, n=w.ndim: (0,) * n))
    out_spec = pl.BlockSpec((1, tq, D), lambda b, q: (b, q, 0))

    # ---- VMEM budget ----
    f32_isz = 4
    cdt_isz = jnp.dtype(compute_dtype).itemsize
    dec_isz = jnp.dtype(decoder_input.dtype).itemsize
    block_bytes = tq * D * dec_isz + Ne * D * cdt_isz + tq * D * dec_isz
    weight_bytes = sum(int(w.size) * jnp.dtype(w.dtype).itemsize for w in weights)
    kv_bytes = Ne * 2 * D * cdt_isz
    interm_bytes = (
        f32_isz * (tq * D            # q projection
                   + 2 * tq * Ne     # scores / probs (one head live)
                   + 4 * tq * D      # attn / res1 / ffn / out
                   + tq * chunk      # ffn hidden slab
                   + Ne * 2 * D)     # kv pre-cast
        + cdt_isz * (2 * tq * D + tq * Ne + tq * chunk + Ne * D))
    needed = 2 * block_bytes + 2 * weight_bytes + kv_bytes + interm_bytes + (4 << 20)
    vmem_cap = int(0.85 * device_vmem)
    vmem_limit = int(min(max(needed, 32 << 20), vmem_cap))

    kernel = functools.partial(
        _cross_attn_block_kernel,
        num_heads=num_heads, ffn_chunks=n_c, compute_dtype=compute_dtype)

    return pl.pallas_call(
        kernel,
        out_shape=jax.ShapeDtypeStruct((B, Nd, D), decoder_input.dtype),
        grid_spec=pltpu.PrefetchScalarGridSpec(
            num_scalar_prefetch=0,
            grid=(B, n_q),
            in_specs=in_specs,
            out_specs=out_spec,
            scratch_shapes=[pltpu.VMEM((Ne, 2 * D), compute_dtype)],
        ),
        compiler_params=pltpu.CompilerParams(
            # q axis carries the per-batch K/V scratch -> "arbitrary".
            dimension_semantics=("parallel", "arbitrary"),
            vmem_limit_bytes=vmem_limit),
    )(decoder_input, encoder_c, *weights)


def make_params(key, d_embed, d_ff):
    ks = jax.random.split(key, 12)

    def lin(k, fan_in, fan_out):
        # deterministic (seeded) init, uniform(-1/sqrt(fan_in), 1/sqrt(fan_in))
        bound = 1.0 / math.sqrt(fan_in)
        kw, kb = jax.random.split(k)
        w = jax.random.uniform(kw, (fan_in, fan_out), jnp.float32, -bound, bound)
        b = jax.random.uniform(kb, (1, fan_out), jnp.float32, -bound, bound)
        return w, b

    wq, bq = lin(ks[0], d_embed, d_embed)
    wk, bk = lin(ks[1], d_embed, d_embed)
    wv, bv = lin(ks[2], d_embed, d_embed)
    wo, bo = lin(ks[3], d_embed, d_embed)
    w1, b1 = lin(ks[4], d_embed, d_ff)
    w2, b2 = lin(ks[5], d_ff, d_embed)
    return {
        "wq": wq, "bq": bq, "wk": wk, "bk": bk, "wv": wv, "bv": bv,
        "wo": wo, "bo": bo,
        "ln1_g": jnp.ones((1, d_embed), jnp.float32),
        "ln1_b": jnp.zeros((1, d_embed), jnp.float32),
        "w1": w1, "b1": b1, "w2": w2, "b2": b2,
        "ln2_g": jnp.ones((1, d_embed), jnp.float32),
        "ln2_b": jnp.zeros((1, d_embed), jnp.float32),
    }


def reference(dec, enc, p, num_heads):
    """Pure-JAX f32 reference of the same forward pass (eval-mode dropout)."""
    B, Nd, D = dec.shape
    dh = D // num_heads
    q = dec @ p["wq"] + p["bq"]
    k = enc @ p["wk"] + p["bk"]
    v = enc @ p["wv"] + p["bv"]
    qh = q.reshape(B, Nd, num_heads, dh).transpose(0, 2, 1, 3)
    kh = k.reshape(B, -1, num_heads, dh).transpose(0, 2, 1, 3)
    vh = v.reshape(B, -1, num_heads, dh).transpose(0, 2, 1, 3)
    s = jnp.einsum("bhqd,bhkd->bhqk", qh, kh) / math.sqrt(dh)
    a = jax.nn.softmax(s, axis=-1)
    o = jnp.einsum("bhqk,bhkd->bhqd", a, vh).transpose(0, 2, 1, 3).reshape(B, Nd, D)
    attn = o @ p["wo"] + p["bo"]

    def ln(x, g, b):
        m = jnp.mean(x, -1, keepdims=True)
        var = jnp.mean((x - m) ** 2, -1, keepdims=True)
        return (x - m) * jax.lax.rsqrt(var + LN_EPS) * g + b

    r1 = ln(dec + attn, p["ln1_g"], p["ln1_b"])
    ffn = jnp.maximum(r1 @ p["w1"] + p["b1"], 0.0) @ p["w2"] + p["b2"]
    return ln(r1 + ffn, p["ln2_g"], p["ln2_b"])


if __name__ == "__main__":
    # NOTE: D_embed=32 (< 128 lanes) makes this toy config layout-bound; kept
    # as-is to match the module's small-shape spec.
    B, N_dec, N_enc, D_embed, N_heads = 2, 8, 16, 32, 4
    d_ff = 4 * D_embed

    key = jax.random.PRNGKey(0)
    k_dec, k_enc, k_par = jax.random.split(key, 3)
    decoder_input = jax.random.normal(k_dec, (B, N_dec, D_embed), jnp.float32)
    encoder_output = jax.random.normal(k_enc, (B, N_enc, D_embed), jnp.float32)
    params = make_params(k_par, D_embed, d_ff)

    out = cross_attention_block(decoder_input, encoder_output, params, N_heads)
    out = jax.block_until_ready(out)

    ref = reference(decoder_input, encoder_output, params, N_heads)
    assert out.shape == (B, N_dec, D_embed)
    # bf16 MXU inputs + approx softmax reciprocal -> slightly looser tolerance
    # than the pure-f32 reference.
    assert jnp.allclose(out, ref, atol=5e-2, rtol=5e-2), "mismatch vs reference"

    print("KERNEL_OK")
</pallas_src>

<mosaic_0001>
module attributes {stable_mosaic.version = 11 : i64} {
  func.func @_cross_attn_block_kernel(%arg0: i32, %arg1: i32, %arg2: memref<1x8x32xf32, #tpu.memory_space<vmem>>, %arg3: memref<1x16x32xbf16, #tpu.memory_space<vmem>>, %arg4: memref<32x32xbf16, #tpu.memory_space<vmem>>, %arg5: memref<1x32xf32, #tpu.memory_space<vmem>>, %arg6: memref<32x64xbf16, #tpu.memory_space<vmem>>, %arg7: memref<1x64xf32, #tpu.memory_space<vmem>>, %arg8: memref<32x32xbf16, #tpu.memory_space<vmem>>, %arg9: memref<1x32xf32, #tpu.memory_space<vmem>>, %arg10: memref<1x32xf32, #tpu.memory_space<vmem>>, %arg11: memref<1x32xf32, #tpu.memory_space<vmem>>, %arg12: memref<1x32x128xbf16, #tpu.memory_space<vmem>>, %arg13: memref<1x1x128xf32, #tpu.memory_space<vmem>>, %arg14: memref<1x128x32xbf16, #tpu.memory_space<vmem>>, %arg15: memref<1x32xf32, #tpu.memory_space<vmem>>, %arg16: memref<1x32xf32, #tpu.memory_space<vmem>>, %arg17: memref<1x32xf32, #tpu.memory_space<vmem>>, %arg18: memref<1x8x32xf32, #tpu.memory_space<vmem>>, %arg19: memref<16x64xbf16, #tpu.memory_space<vmem>>) attributes {dimension_semantics = [#tpu.dimension_semantics<parallel>, #tpu.dimension_semantics<arbitrary>], iteration_bounds = array<i64: 2, 1>, scalar_prefetch = 0 : i64, scratch_operands = 1 : i64, tpu.core_type = #tpu.core_type<tc>, window_params = [{transform_indices = @transform_0, window_bounds = array<i64: 1, 8, 32>}, {transform_indices = @transform_1, window_bounds = array<i64: 1, 16, 32>}, {pipeline_mode = #tpu.pipeline_mode<synchronous>, transform_indices = @transform_2, window_bounds = array<i64: 32, 32>}, {pipeline_mode = #tpu.pipeline_mode<synchronous>, transform_indices = @transform_3, window_bounds = array<i64: 1, 32>}, {pipeline_mode = #tpu.pipeline_mode<synchronous>, transform_indices = @transform_4, window_bounds = array<i64: 32, 64>}, {pipeline_mode = #tpu.pipeline_mode<synchronous>, transform_indices = @transform_5, window_bounds = array<i64: 1, 64>}, {pipeline_mode = #tpu.pipeline_mode<synchronous>, transform_indices = @transform_6, window_bounds = array<i64: 32, 32>}, {pipeline_mode = #tpu.pipeline_mode<synchronous>, transform_indices = @transform_7, window_bounds = array<i64: 1, 32>}, {pipeline_mode = #tpu.pipeline_mode<synchronous>, transform_indices = @transform_8, window_bounds = array<i64: 1, 32>}, {pipeline_mode = #tpu.pipeline_mode<synchronous>, transform_indices = @transform_9, window_bounds = array<i64: 1, 32>}, {pipeline_mode = #tpu.pipeline_mode<synchronous>, transform_indices = @transform_10, window_bounds = array<i64: 1, 32, 128>}, {pipeline_mode = #tpu.pipeline_mode<synchronous>, transform_indices = @transform_11, window_bounds = array<i64: 1, 1, 128>}, {pipeline_mode = #tpu.pipeline_mode<synchronous>, transform_indices = @transform_12, window_bounds = array<i64: 1, 128, 32>}, {pipeline_mode = #tpu.pipeline_mode<synchronous>, transform_indices = @transform_13, window_bounds = array<i64: 1, 32>}, {pipeline_mode = #tpu.pipeline_mode<synchronous>, transform_indices = @transform_14, window_bounds = array<i64: 1, 32>}, {pipeline_mode = #tpu.pipeline_mode<synchronous>, transform_indices = @transform_15, window_bounds = array<i64: 1, 32>}, {transform_indices = @transform_16, window_bounds = array<i64: 1, 8, 32>}]} {
    %c0_i32 = arith.constant 0 : i32
    %0 = arith.cmpi eq, %arg1, %c0_i32 : i32
    %1 = arith.extui %0 : i1 to i32
    %c0_i32_0 = arith.constant 0 : i32
    %2 = arith.cmpi ne, %1, %c0_i32_0 : i32
    scf.if %2 {
      %c0_73 = arith.constant 0 : index
      %c0_74 = arith.constant 0 : index
      %c0_75 = arith.constant 0 : index
      %158 = vector.load %arg3[%c0_73, %c0_74, %c0_75] : memref<1x16x32xbf16, #tpu.memory_space<vmem>>, vector<1x16x32xbf16>
      %159 = vector.shape_cast %158 : vector<1x16x32xbf16> to vector<16x32xbf16>
      %c0_76 = arith.constant 0 : index
      %c0_77 = arith.constant 0 : index
      %160 = vector.load %arg6[%c0_76, %c0_77] : memref<32x64xbf16, #tpu.memory_space<vmem>>, vector<32x64xbf16>
      %cst_78 = arith.constant dense<0.000000e+00> : vector<16x64xf32>
      %161 = tpu.matmul %159, %160, %cst_78 {dimension_numbers = #tpu.dot_dimension_numbers<[1], [0], [0], [1], [0, 0, 1, 1], [], []>} : vector<16x32xbf16>, vector<32x64xbf16>, vector<16x64xf32> -> vector<16x64xf32>
      %c0_79 = arith.constant 0 : index
      %c0_80 = arith.constant 0 : index
      %162 = vector.load %arg7[%c0_79, %c0_80] : memref<1x64xf32, #tpu.memory_space<vmem>>, vector<1x64xf32>
      %163 = vector.broadcast %162 : vector<1x64xf32> to vector<16x64xf32>
      %164 = arith.addf %161, %163 : vector<16x64xf32>
      %165 = arith.truncf %164 : vector<16x64xf32> to vector<16x64xbf16>
      %c0_81 = arith.constant 0 : index
      %c0_82 = arith.constant 0 : index
      %166 = vector.load %arg19[%c0_81, %c0_82] : memref<16x64xbf16, #tpu.memory_space<vmem>>, vector<16x64xbf16>
      tpu.vector_store %arg19[%c0_81, %c0_82], %165 {strides = array<i32>} : memref<16x64xbf16, #tpu.memory_space<vmem>>, vector<16x64xbf16>,
    } else {
    }
    %c0 = arith.constant 0 : index
    %c0_1 = arith.constant 0 : index
    %c0_2 = arith.constant 0 : index
    %3 = vector.load %arg2[%c0, %c0_1, %c0_2] : memref<1x8x32xf32, #tpu.memory_space<vmem>>, vector<1x8x32xf32>
    %4 = vector.shape_cast %3 : vector<1x8x32xf32> to vector<8x32xf32>
    %5 = arith.truncf %4 : vector<8x32xf32> to vector<8x32xbf16>
    %c0_3 = arith.constant 0 : index
    %c0_4 = arith.constant 0 : index
    %6 = vector.load %arg4[%c0_3, %c0_4] : memref<32x32xbf16, #tpu.memory_space<vmem>>, vector<32x32xbf16>
    %cst = arith.constant dense<0.000000e+00> : vector<8x32xf32>
    %7 = tpu.matmul %5, %6, %cst {dimension_numbers = #tpu.dot_dimension_numbers<[1], [0], [0], [1], [0, 0, 1, 1], [], []>} : vector<8x32xbf16>, vector<32x32xbf16>, vector<8x32xf32> -> vector<8x32xf32>
    %c0_5 = arith.constant 0 : index
    %c0_6 = arith.constant 0 : index
    %8 = vector.load %arg5[%c0_5, %c0_6] : memref<1x32xf32, #tpu.memory_space<vmem>>, vector<1x32xf32>
    %9 = vector.broadcast %8 : vector<1x32xf32> to vector<8x32xf32>
    %10 = arith.addf %7, %9 : vector<8x32xf32>
    %11 = arith.truncf %10 : vector<8x32xf32> to vector<8x32xbf16>
    %12 = vector.extract_strided_slice %11 {offsets = [0, 0], sizes = [8, 8], strides = [1, 1]} : vector<8x32xbf16> to vector<8x8xbf16>
    %c0_7 = arith.constant 0 : index
    %c0_8 = arith.constant 0 : index
    %13 = vector.load %arg19[%c0_7, %c0_8] : memref<16x64xbf16, #tpu.memory_space<vmem>>, vector<16x8xbf16>
    %c0_9 = arith.constant 0 : index
    %c32 = arith.constant 32 : index
    %14 = vector.load %arg19[%c0_9, %c32] : memref<16x64xbf16, #tpu.memory_space<vmem>>, vector<16x8xbf16>
    %cst_10 = arith.constant dense<0.000000e+00> : vector<8x16xf32>
    %15 = tpu.matmul %12, %13, %cst_10 {dimension_numbers = #tpu.dot_dimension_numbers<[1], [1], [0], [0], [0, 0, 1, 0], [], []>} : vector<8x8xbf16>, vector<16x8xbf16>, vector<8x16xf32> -> vector<8x16xf32>
    %cst_11 = arith.constant dense<0xFF800000> : vector<8xf32>
    %16 = vector.multi_reduction <maximumf>, %15, %cst_11 [1] : vector<8x16xf32> to vector<8xf32>
    %17 = vector.shape_cast %16 : vector<8xf32> to vector<8x1xf32>
    %18 = vector.broadcast %17 : vector<8x1xf32> to vector<8x16xf32>
    %19 = arith.subf %15, %18 : vector<8x16xf32>
    %20 = math.exp %19 : vector<8x16xf32>
    %cst_12 = arith.constant dense<0.000000e+00> : vector<8xf32>
    %21 = vector.multi_reduction <add>, %20, %cst_12 [1] : vector<8x16xf32> to vector<8xf32>
    %22 = vector.shape_cast %21 : vector<8xf32> to vector<8x1xf32>
    %23 = tpu.reciprocal %22 {approx = true} : vector<8x1xf32> -> vector<8x1xf32>
    %24 = vector.broadcast %23 : vector<8x1xf32> to vector<8x16xf32>
    %25 = arith.mulf %20, %24 : vector<8x16xf32>
    %26 = arith.truncf %25 : vector<8x16xf32> to vector<8x16xbf16>
    %cst_13 = arith.constant dense<0.000000e+00> : vector<8x8xf32>
    %27 = tpu.matmul %26, %14, %cst_13 {dimension_numbers = #tpu.dot_dimension_numbers<[1], [0], [0], [1], [0, 0, 1, 1], [], []>} : vector<8x16xbf16>, vector<16x8xbf16>, vector<8x8xf32> -> vector<8x8xf32>
    %28 = arith.truncf %27 : vector<8x8xf32> to vector<8x8xbf16>
    %29 = vector.extract_strided_slice %11 {offsets = [0, 8], sizes = [8, 8], strides = [1, 1]} : vector<8x32xbf16> to vector<8x8xbf16>
    %c0_14 = arith.constant 0 : index
    %c8 = arith.constant 8 : index
    %30 = vector.load %arg19[%c0_14, %c8] : memref<16x64xbf16, #tpu.memory_space<vmem>>, vector<16x8xbf16>
    %c0_15 = arith.constant 0 : index
    %c40 = arith.constant 40 : index
    %31 = vector.load %arg19[%c0_15, %c40] : memref<16x64xbf16, #tpu.memory_space<vmem>>, vector<16x8xbf16>
    %cst_16 = arith.constant dense<0.000000e+00> : vector<8x16xf32>
    %32 = tpu.matmul %29, %30, %cst_16 {dimension_numbers = #tpu.dot_dimension_numbers<[1], [1], [0], [0], [0, 0, 1, 0], [], []>} : vector<8x8xbf16>, vector<16x8xbf16>, vector<8x16xf32> -> vector<8x16xf32>
    %cst_17 = arith.constant dense<0xFF800000> : vector<8xf32>
    %33 = vector.multi_reduction <maximumf>, %32, %cst_17 [1] : vector<8x16xf32> to vector<8xf32>
    %34 = vector.shape_cast %33 : vector<8xf32> to vector<8x1xf32>
    %35 = vector.broadcast %34 : vector<8x1xf32> to vector<8x16xf32>
    %36 = arith.subf %32, %35 : vector<8x16xf32>
    %37 = math.exp %36 : vector<8x16xf32>
    %cst_18 = arith.constant dense<0.000000e+00> : vector<8xf32>
    %38 = vector.multi_reduction <add>, %37, %cst_18 [1] : vector<8x16xf32> to vector<8xf32>
    %39 = vector.shape_cast %38 : vector<8xf32> to vector<8x1xf32>
    %40 = tpu.reciprocal %39 {approx = true} : vector<8x1xf32> -> vector<8x1xf32>
    %41 = vector.broadcast %40 : vector<8x1xf32> to vector<8x16xf32>
    %42 = arith.mulf %37, %41 : vector<8x16xf32>
    %43 = arith.truncf %42 : vector<8x16xf32> to vector<8x16xbf16>
    %cst_19 = arith.constant dense<0.000000e+00> : vector<8x8xf32>
    %44 = tpu.matmul %43, %31, %cst_19 {dimension_numbers = #tpu.dot_dimension_numbers<[1], [0], [0], [1], [0, 0, 1, 1], [], []>} : vector<8x16xbf16>, vector<16x8xbf16>, vector<8x8xf32> -> vector<8x8xf32>
    %45 = arith.truncf %44 : vector<8x8xf32> to vector<8x8xbf16>
    %46 = vector.extract_strided_slice %11 {offsets = [0, 16], sizes = [8, 8], strides = [1, 1]} : vector<8x32xbf16> to vector<8x8xbf16>
    %c0_20 = arith.constant 0 : index
    %c16 = arith.constant 16 : index
    %47 = vector.load %arg19[%c0_20, %c16] : memref<16x64xbf16, #tpu.memory_space<vmem>>, vector<16x8xbf16>
    %c0_21 = arith.constant 0 : index
    %c48 = arith.constant 48 : index
    %48 = vector.load %arg19[%c0_21, %c48] : memref<16x64xbf16, #tpu.memory_space<vmem>>, vector<16x8xbf16>
    %cst_22 = arith.constant dense<0.000000e+00> : vector<8x16xf32>
    %49 = tpu.matmul %46, %47, %cst_22 {dimension_numbers = #tpu.dot_dimension_numbers<[1], [1], [0], [0], [0, 0, 1, 0], [], []>} : vector<8x8xbf16>, vector<16x8xbf16>, vector<8x16xf32> -> vector<8x16xf32>
    %cst_23 = arith.constant dense<0xFF800000> : vector<8xf32>
    %50 = vector.multi_reduction <maximumf>, %49, %cst_23 [1] : vector<8x16xf32> to vector<8xf32>
    %51 = vector.shape_cast %50 : vector<8xf32> to vector<8x1xf32>
    %52 = vector.broadcast %51 : vector<8x1xf32> to vector<8x16xf32>
    %53 = arith.subf %49, %52 : vector<8x16xf32>
    %54 = math.exp %53 : vector<8x16xf32>
    %cst_24 = arith.constant dense<0.000000e+00> : vector<8xf32>
    %55 = vector.multi_reduction <add>, %54, %cst_24 [1] : vector<8x16xf32> to vector<8xf32>
    %56 = vector.shape_cast %55 : vector<8xf32> to vector<8x1xf32>
    %57 = tpu.reciprocal %56 {approx = true} : vector<8x1xf32> -> vector<8x1xf32>
    %58 = vector.broadcast %57 : vector<8x1xf32> to vector<8x16xf32>
    %59 = arith.mulf %54, %58 : vector<8x16xf32>
    %60 = arith.truncf %59 : vector<8x16xf32> to vector<8x16xbf16>
    %cst_25 = arith.constant dense<0.000000e+00> : vector<8x8xf32>
    %61 = tpu.matmul %60, %48, %cst_25 {dimension_numbers = #tpu.dot_dimension_numbers<[1], [0], [0], [1], [0, 0, 1, 1], [], []>} : vector<8x16xbf16>, vector<16x8xbf16>, vector<8x8xf32> -> vector<8x8xf32>
    %62 = arith.truncf %61 : vector<8x8xf32> to vector<8x8xbf16>
    %63 = vector.extract_strided_slice %11 {offsets = [0, 24], sizes = [8, 8], strides = [1, 1]} : vector<8x32xbf16> to vector<8x8xbf16>
    %c0_26 = arith.constant 0 : index
    %c24 = arith.constant 24 : index
    %64 = vector.load %arg19[%c0_26, %c24] : memref<16x64xbf16, #tpu.memory_space<vmem>>, vector<16x8xbf16>
    %c0_27 = arith.constant 0 : index
    %c56 = arith.constant 56 : index
    %65 = vector.load %arg19[%c0_27, %c56] : memref<16x64xbf16, #tpu.memory_space<vmem>>, vector<16x8xbf16>
    %cst_28 = arith.constant dense<0.000000e+00> : vector<8x16xf32>
    %66 = tpu.matmul %63, %64, %cst_28 {dimension_numbers = #tpu.dot_dimension_numbers<[1], [1], [0], [0], [0, 0, 1, 0], [], []>} : vector<8x8xbf16>, vector<16x8xbf16>, vector<8x16xf32> -> vector<8x16xf32>
    %cst_29 = arith.constant dense<0xFF800000> : vector<8xf32>
    %67 = vector.multi_reduction <maximumf>, %66, %cst_29 [1] : vector<8x16xf32> to vector<8xf32>
    %68 = vector.shape_cast %67 : vector<8xf32> to vector<8x1xf32>
    %69 = vector.broadcast %68 : vector<8x1xf32> to vector<8x16xf32>
    %70 = arith.subf %66, %69 : vector<8x16xf32>
    %71 = math.exp %70 : vector<8x16xf32>
    %cst_30 = arith.constant dense<0.000000e+00> : vector<8xf32>
    %72 = vector.multi_reduction <add>, %71, %cst_30 [1] : vector<8x16xf32> to vector<8xf32>
    %73 = vector.shape_cast %72 : vector<8xf32> to vector<8x1xf32>
    %74 = tpu.reciprocal %73 {approx = true} : vector<8x1xf32> -> vector<8x1xf32>
    %75 = vector.broadcast %74 : vector<8x1xf32> to vector<8x16xf32>
    %76 = arith.mulf %71, %75 : vector<8x16xf32>
    %77 = arith.truncf %76 : vector<8x16xf32> to vector<8x16xbf16>
    %cst_31 = arith.constant dense<0.000000e+00> : vector<8x8xf32>
    %78 = tpu.matmul %77, %65, %cst_31 {dimension_numbers = #tpu.dot_dimension_numbers<[1], [0], [0], [1], [0, 0, 1, 1], [], []>} : vector<8x16xbf16>, vector<16x8xbf16>, vector<8x8xf32> -> vector<8x8xf32>
    %79 = arith.truncf %78 : vector<8x8xf32> to vector<8x8xbf16>
    %80 = tpu.concatenate %28, %45, %62, %79 in 1 : vector<8x8xbf16>, vector<8x8xbf16>, vector<8x8xbf16>, vector<8x8xbf16> -> vector<8x32xbf16>
    %c0_32 = arith.constant 0 : index
    %c0_33 = arith.constant 0 : index
    %81 = vector.load %arg8[%c0_32, %c0_33] : memref<32x32xbf16, #tpu.memory_space<vmem>>, vector<32x32xbf16>
    %cst_34 = arith.constant dense<0.000000e+00> : vector<8x32xf32>
    %82 = tpu.matmul %80, %81, %cst_34 {dimension_numbers = #tpu.dot_dimension_numbers<[1], [0], [0], [1], [0, 0, 1, 1], [], []>} : vector<8x32xbf16>, vector<32x32xbf16>, vector<8x32xf32> -> vector<8x32xf32>
    %c0_35 = arith.constant 0 : index
    %c0_36 = arith.constant 0 : index
    %83 = vector.load %arg9[%c0_35, %c0_36] : memref<1x32xf32, #tpu.memory_space<vmem>>, vector<1x32xf32>
    %84 = vector.broadcast %83 : vector<1x32xf32> to vector<8x32xf32>
    %85 = arith.addf %82, %84 : vector<8x32xf32>
    %86 = arith.addf %4, %85 : vector<8x32xf32>
    %c0_37 = arith.constant 0 : index
    %c0_38 = arith.constant 0 : index
    %87 = vector.load %arg10[%c0_37, %c0_38] : memref<1x32xf32, #tpu.memory_space<vmem>>, vector<1x32xf32>
    %c0_39 = arith.constant 0 : index
    %c0_40 = arith.constant 0 : index
    %88 = vector.load %arg11[%c0_39, %c0_40] : memref<1x32xf32, #tpu.memory_space<vmem>>, vector<1x32xf32>
    %cst_41 = arith.constant dense<0.000000e+00> : vector<8xf32>
    %89 = vector.multi_reduction <add>, %86, %cst_41 [1] : vector<8x32xf32> to vector<8xf32>
    %90 = vector.shape_cast %89 : vector<8xf32> to vector<8x1xf32>
    %cst_42 = arith.constant 3.200000e+01 : f32
    %91 = vector.broadcast %cst_42 : f32 to vector<8x1xf32>
    %92 = arith.divf %90, %91 : vector<8x1xf32>
    %93 = vector.broadcast %92 : vector<8x1xf32> to vector<8x32xf32>
    %94 = arith.subf %86, %93 : vector<8x32xf32>
    %95 = arith.mulf %94, %94 : vector<8x32xf32>
    %cst_43 = arith.constant dense<0.000000e+00> : vector<8xf32>
    %96 = vector.multi_reduction <add>, %95, %cst_43 [1] : vector<8x32xf32> to vector<8xf32>
    %97 = vector.shape_cast %96 : vector<8xf32> to vector<8x1xf32>
    %cst_44 = arith.constant 3.200000e+01 : f32
    %98 = vector.broadcast %cst_44 : f32 to vector<8x1xf32>
    %99 = arith.divf %97, %98 : vector<8x1xf32>
    %100 = vector.broadcast %92 : vector<8x1xf32> to vector<8x32xf32>
    %101 = arith.subf %86, %100 : vector<8x32xf32>
    %cst_45 = arith.constant 9.99999974E-6 : f32
    %102 = vector.broadcast %cst_45 : f32 to vector<8x1xf32>
    %103 = arith.addf %99, %102 : vector<8x1xf32>
    %104 = math.rsqrt %103 : vector<8x1xf32>
    %105 = vector.broadcast %104 : vector<8x1xf32> to vector<8x32xf32>
    %106 = arith.mulf %101, %105 : vector<8x32xf32>
    %107 = vector.broadcast %87 : vector<1x32xf32> to vector<8x32xf32>
    %108 = arith.mulf %106, %107 : vector<8x32xf32>
    %109 = vector.broadcast %88 : vector<1x32xf32> to vector<8x32xf32>
    %110 = arith.addf %108, %109 : vector<8x32xf32>
    %111 = arith.truncf %110 : vector<8x32xf32> to vector<8x32xbf16>
    %cst_46 = arith.constant 0.000000e+00 : f32
    %112 = vector.broadcast %cst_46 : f32 to vector<8x32xf32>
    %c0_47 = arith.constant 0 : index
    %c0_48 = arith.constant 0 : index
    %c0_49 = arith.constant 0 : index
    %113 = vector.load %arg12[%c0_47, %c0_48, %c0_49] : memref<1x32x128xbf16, #tpu.memory_space<vmem>>, vector<1x32x128xbf16>
    %114 = vector.shape_cast %113 : vector<1x32x128xbf16> to vector<32x128xbf16>
    %cst_50 = arith.constant dense<0.000000e+00> : vector<8x128xf32>
    %115 = tpu.matmul %111, %114, %cst_50 {dimension_numbers = #tpu.dot_dimension_numbers<[1], [0], [0], [1], [0, 0, 1, 1], [], []>} : vector<8x32xbf16>, vector<32x128xbf16>, vector<8x128xf32> -> vector<8x128xf32>
    %c0_51 = arith.constant 0 : index
    %c0_52 = arith.constant 0 : index
    %c0_53 = arith.constant 0 : index
    %116 = vector.load %arg13[%c0_51, %c0_52, %c0_53] : memref<1x1x128xf32, #tpu.memory_space<vmem>>, vector<1x1x128xf32>
    %117 = vector.shape_cast %116 : vector<1x1x128xf32> to vector<1x128xf32>
    %118 = vector.broadcast %117 : vector<1x128xf32> to vector<8x128xf32>
    %119 = arith.addf %115, %118 : vector<8x128xf32>
    %cst_54 = arith.constant 0.000000e+00 : f32
    %120 = vector.broadcast %cst_54 : f32 to vector<8x128xf32>
    %121 = arith.maximumf %119, %120 : vector<8x128xf32>
    %122 = arith.truncf %121 : vector<8x128xf32> to vector<8x128xbf16>
    %c0_55 = arith.constant 0 : index
    %c0_56 = arith.constant 0 : index
    %c0_57 = arith.constant 0 : index
    %123 = vector.load %arg14[%c0_55, %c0_56, %c0_57] : memref<1x128x32xbf16, #tpu.memory_space<vmem>>, vector<1x128x32xbf16>
    %124 = vector.shape_cast %123 : vector<1x128x32xbf16> to vector<128x32xbf16>
    %cst_58 = arith.constant dense<0.000000e+00> : vector<8x32xf32>
    %125 = tpu.matmul %122, %124, %cst_58 {dimension_numbers = #tpu.dot_dimension_numbers<[1], [0], [0], [1], [0, 0, 1, 1], [], []>} : vector<8x128xbf16>, vector<128x32xbf16>, vector<8x32xf32> -> vector<8x32xf32>
    %126 = arith.addf %112, %125 : vector<8x32xf32>
    %c0_59 = arith.constant 0 : index
    %c0_60 = arith.constant 0 : index
    %127 = vector.load %arg15[%c0_59, %c0_60] : memref<1x32xf32, #tpu.memory_space<vmem>>, vector<1x32xf32>
    %128 = vector.broadcast %127 : vector<1x32xf32> to vector<8x32xf32>
    %129 = arith.addf %126, %128 : vector<8x32xf32>
    %130 = arith.addf %110, %129 : vector<8x32xf32>
    %c0_61 = arith.constant 0 : index
    %c0_62 = arith.constant 0 : index
    %131 = vector.load %arg16[%c0_61, %c0_62] : memref<1x32xf32, #tpu.memory_space<vmem>>, vector<1x32xf32>
    %c0_63 = arith.constant 0 : index
    %c0_64 = arith.constant 0 : index
    %132 = vector.load %arg17[%c0_63, %c0_64] : memref<1x32xf32, #tpu.memory_space<vmem>>, vector<1x32xf32>
    %cst_65 = arith.constant dense<0.000000e+00> : vector<8xf32>
    %133 = vector.multi_reduction <add>, %130, %cst_65 [1] : vector<8x32xf32> to vector<8xf32>
    %134 = vector.shape_cast %133 : vector<8xf32> to vector<8x1xf32>
    %cst_66 = arith.constant 3.200000e+01 : f32
    %135 = vector.broadcast %cst_66 : f32 to vector<8x1xf32>
    %136 = arith.divf %134, %135 : vector<8x1xf32>
    %137 = vector.broadcast %136 : vector<8x1xf32> to vector<8x32xf32>
    %138 = arith.subf %130, %137 : vector<8x32xf32>
    %139 = arith.mulf %138, %138 : vector<8x32xf32>
    %cst_67 = arith.constant dense<0.000000e+00> : vector<8xf32>
    %140 = vector.multi_reduction <add>, %139, %cst_67 [1] : vector<8x32xf32> to vector<8xf32>
    %141 = vector.shape_cast %140 : vector<8xf32> to vector<8x1xf32>
    %cst_68 = arith.constant 3.200000e+01 : f32
    %142 = vector.broadcast %cst_68 : f32 to vector<8x1xf32>
    %143 = arith.divf %141, %142 : vector<8x1xf32>
    %144 = vector.broadcast %136 : vector<8x1xf32> to vector<8x32xf32>
    %145 = arith.subf %130, %144 : vector<8x32xf32>
    %cst_69 = arith.constant 9.99999974E-6 : f32
    %146 = vector.broadcast %cst_69 : f32 to vector<8x1xf32>
    %147 = arith.addf %143, %146 : vector<8x1xf32>
    %148 = math.rsqrt %147 : vector<8x1xf32>
    %149 = vector.broadcast %148 : vector<8x1xf32> to vector<8x32xf32>
    %150 = arith.mulf %145, %149 : vector<8x32xf32>
    %151 = vector.broadcast %131 : vector<1x32xf32> to vector<8x32xf32>
    %152 = arith.mulf %150, %151 : vector<8x32xf32>
    %153 = vector.broadcast %132 : vector<1x32xf32> to vector<8x32xf32>
    %154 = arith.addf %152, %153 : vector<8x32xf32>
    %c0_70 = arith.constant 0 : index
    %c0_71 = arith.constant 0 : index
    %c0_72 = arith.constant 0 : index
    %155 = vector.load %arg18[%c0_70, %c0_71, %c0_72] : memref<1x8x32xf32, #tpu.memory_space<vmem>>, vector<1x8x32xf32>
    %156 = vector.shape_cast %155 : vector<1x8x32xf32> to vector<8x32xf32>
    %157 = vector.shape_cast %154 : vector<8x32xf32> to vector<1x8x32xf32>
    tpu.vector_store %arg18[%c0_70, %c0_71, %c0_72], %157 {strides = array<i32>} : memref<1x8x32xf32, #tpu.memory_space<vmem>>, vector<1x8x32xf32>,
    return
  }
  func.func @transform_0(%arg0: i32, %arg1: i32) -> (i32, i32, i32) {
    %c0_i32 = arith.constant 0 : i32
    %c0_i32_0 = arith.constant 0 : i32
    return %arg0, %arg1, %c0_i32 : i32, i32, i32
  }
  func.func @transform_1(%arg0: i32, %arg1: i32) -> (i32, i32, i32) {
    %c0_i32 = arith.constant 0 : i32
    %c0_i32_0 = arith.constant 0 : i32
    %c0_i32_1 = arith.constant 0 : i32
    return %arg0, %c0_i32, %c0_i32_0 : i32, i32, i32
  }
  func.func @transform_2(%arg0: i32, %arg1: i32) -> (i32, i32) {
    %c0_i32 = arith.constant 0 : i32
    %c0_i32_0 = arith.constant 0 : i32
    %c0_i32_1 = arith.constant 0 : i32
    return %c0_i32, %c0_i32_0 : i32, i32
  }
  func.func @transform_3(%arg0: i32, %arg1: i32) -> (i32, i32) {
    %c0_i32 = arith.constant 0 : i32
    %c0_i32_0 = arith.constant 0 : i32
    %c0_i32_1 = arith.constant 0 : i32
    return %c0_i32, %c0_i32_0 : i32, i32
  }
  func.func @transform_4(%arg0: i32, %arg1: i32) -> (i32, i32) {
    %c0_i32 = arith.constant 0 : i32
    %c0_i32_0 = arith.constant 0 : i32
    %c0_i32_1 = arith.constant 0 : i32
    return %c0_i32, %c0_i32_0 : i32, i32
  }
  func.func @transform_5(%arg0: i32, %arg1: i32) -> (i32, i32) {
    %c0_i32 = arith.constant 0 : i32
    %c0_i32_0 = arith.constant 0 : i32
    %c0_i32_1 = arith.constant 0 : i32
    return %c0_i32, %c0_i32_0 : i32, i32
  }
  func.func @transform_6(%arg0: i32, %arg1: i32) -> (i32, i32) {
    %c0_i32 = arith.constant 0 : i32
    %c0_i32_0 = arith.constant 0 : i32
    %c0_i32_1 = arith.constant 0 : i32
    return %c0_i32, %c0_i32_0 : i32, i32
  }
  func.func @transform_7(%arg0: i32, %arg1: i32) -> (i32, i32) {
    %c0_i32 = arith.constant 0 : i32
    %c0_i32_0 = arith.constant 0 : i32
    %c0_i32_1 = arith.constant 0 : i32
    return %c0_i32, %c0_i32_0 : i32, i32
  }
  func.func @transform_8(%arg0: i32, %arg1: i32) -> (i32, i32) {
    %c0_i32 = arith.constant 0 : i32
    %c0_i32_0 = arith.constant 0 : i32
    %c0_i32_1 = arith.constant 0 : i32
    return %c0_i32, %c0_i32_0 : i32, i32
  }
  func.func @transform_9(%arg0: i32, %arg1: i32) -> (i32, i32) {
    %c0_i32 = arith.constant 0 : i32
    %c0_i32_0 = arith.constant 0 : i32
    %c0_i32_1 = arith.constant 0 : i32
    return %c0_i32, %c0_i32_0 : i32, i32
  }
  func.func @transform_10(%arg0: i32, %arg1: i32) -> (i32, i32, i32) {
    %c0_i32 = arith.constant 0 : i32
    %c0_i32_0 = arith.constant 0 : i32
    %c0_i32_1 = arith.constant 0 : i32
    %c0_i32_2 = arith.constant 0 : i32
    return %c0_i32, %c0_i32_0, %c0_i32_1 : i32, i32, i32
  }
  func.func @transform_11(%arg0: i32, %arg1: i32) -> (i32, i32, i32) {
    %c0_i32 = arith.constant 0 : i32
    %c0_i32_0 = arith.constant 0 : i32
    %c0_i32_1 = arith.constant 0 : i32
    %c0_i32_2 = arith.constant 0 : i32
    return %c0_i32, %c0_i32_0, %c0_i32_1 : i32, i32, i32
  }
  func.func @transform_12(%arg0: i32, %arg1: i32) -> (i32, i32, i32) {
    %c0_i32 = arith.constant 0 : i32
    %c0_i32_0 = arith.constant 0 : i32
    %c0_i32_1 = arith.constant 0 : i32
    %c0_i32_2 = arith.constant 0 : i32
    return %c0_i32, %c0_i32_0, %c0_i32_1 : i32, i32, i32
  }
  func.func @transform_13(%arg0: i32, %arg1: i32) -> (i32, i32) {
    %c0_i32 = arith.constant 0 : i32
    %c0_i32_0 = arith.constant 0 : i32
    %c0_i32_1 = arith.constant 0 : i32
    return %c0_i32, %c0_i32_0 : i32, i32
  }
  func.func @transform_14(%arg0: i32, %arg1: i32) -> (i32, i32) {
    %c0_i32 = arith.constant 0 : i32
    %c0_i32_0 = arith.constant 0 : i32
    %c0_i32_1 = arith.constant 0 : i32
    return %c0_i32, %c0_i32_0 : i32, i32
  }
  func.func @transform_15(%arg0: i32, %arg1: i32) -> (i32, i32) {
    %c0_i32 = arith.constant 0 : i32
    %c0_i32_0 = arith.constant 0 : i32
    %c0_i32_1 = arith.constant 0 : i32
    return %c0_i32, %c0_i32_0 : i32, i32
  }
  func.func @transform_16(%arg0: i32, %arg1: i32) -> (i32, i32, i32) {
    %c0_i32 = arith.constant 0 : i32
    %c0_i32_0 = arith.constant 0 : i32
    return %arg0, %arg1, %c0_i32 : i32, i32, i32
  }
}

</mosaic_0001>

<llo_original>
// kernel: tpu_custom_call.1
$region0: #{tpu_custom_call.1}
  #allocation0 [shape = 'u32[]', space=smem, size = 0x4, offset = 0x4, fixed_abs, tag = 'smem constant byte address 0x4 - core index']
  #allocation1 [shape = 'u32[144,128]{1,0:T(1,128)}', space=vmem, size = 0x12000, scoped, tag = 'internal scratch']
  #allocation2 [shape = 'bf16[16,64]{1,0:T(16,128)(2,1)}', space=vmem, size = 0x1000, scoped, tag = 'scratch operand']
  %s0 = inlined_call_operand.vmem [shape: f32[2,8,32], index: 0, kind: input, shape index: {}]
  %s1 = inlined_call_operand.vmem [shape: bf16[2,16,32], index: 1, kind: input, shape index: {}]
  %s2 = inlined_call_operand.vmem [shape: bf16[32,32], index: 2, kind: input, shape index: {}]
  %s3 = inlined_call_operand.vmem [shape: f32[1,32], index: 3, kind: input, shape index: {}]
  %s4 = inlined_call_operand.vmem [shape: bf16[32,64], index: 4, kind: input, shape index: {}]
  %s5 = inlined_call_operand.vmem [shape: f32[1,64], index: 5, kind: input, shape index: {}]
  %s6 = inlined_call_operand.vmem [shape: bf16[32,32], index: 6, kind: input, shape index: {}]
  %s7 = inlined_call_operand.hbm [shape: f32[1,32], index: 7, kind: input, shape index: {}]
  %s8 = inlined_call_operand.hbm [shape: f32[1,32], index: 8, kind: input, shape index: {}]
  %s9 = inlined_call_operand.hbm [shape: f32[1,32], index: 9, kind: input, shape index: {}]
  %s10 = inlined_call_operand.vmem [shape: bf16[1,32,128], index: 10, kind: input, shape index: {}]
  %s11 = inlined_call_operand.vmem [shape: f32[1,1,128], index: 11, kind: input, shape index: {}]
  %s12 = inlined_call_operand.vmem [shape: bf16[1,128,32], index: 12, kind: input, shape index: {}]
  %s13 = inlined_call_operand.vmem [shape: f32[1,32], index: 13, kind: input, shape index: {}]
  %s14 = inlined_call_operand.vmem [shape: f32[1,32], index: 14, kind: input, shape index: {}]
  %s15 = inlined_call_operand.vmem [shape: f32[1,32], index: 15, kind: input, shape index: {}]
  %s16 = inlined_call_operand.hbm [shape: f32[2,8,32], index: 16, kind: output, shape index: {}]
  %s17 = sld [smem:[#allocation0]]
  $region113: #{tpu_custom_call.1} parent=0
    _
  %s19 = ssub.s32 1, %s17
  %s20 = scalar_select 0, %s19, %s17
  $region1: #{tpu_custom_call.1} parent=0
    #allocation3 [shape = 'u8[512]{0}', space=vmem, size = 0x400, scoped, tag = 'input window, operand 7, single buffered']
    #allocation4 [shape = 's32[2]{0}', space=sflag, size = 0x8, scoped, tag = 'scoped memory for tpu_custom_call.1']
    #allocation5 [shape = 's32[2]{0}', space=sflag, size = 0x8, scoped, tag = 'scoped memory for tpu_custom_call.1']
    #allocation6 [shape = 'u8[512]{0}', space=vmem, size = 0x400, scoped, tag = 'input window, operand 8, single buffered']
    #allocation7 [shape = 's32[1]{0}', space=sflag, size = 0x4, scoped, tag = 'scoped memory for tpu_custom_call.1']
    #allocation8 [shape = 'u8[512]{0}', space=vmem, size = 0x400, scoped, tag = 'input window, operand 9, single buffered']
    #allocation9 [shape = 'u8[8192]{0}', space=vmem, size = 0x2000, scoped, tag = 'output window, operand 0']
    %21 = vsyncpa [#allocation4], 0
    %22 = vsyncpa [#allocation7], 0
    %23 = vsyncpa [#allocation5], 0
    %s24 = scalar_lea.sflag [#allocation5], 1
    %25 = vsyncpa %s24, 0
    loop: start=0, step=1, limit=4
    $region2: #{tpu_custom_call.1} parent=1 // loop_pre_header
      _
    $region3: #{tpu_custom_call.1} parent=1 // loop_header
      %s27 = sphi 0, %s31
      %p28 = scmp.ge.s32.totalorder %s27, 4
      %s34 = sphi 0, %s46
      %s35 = sphi 0, %s42
      %s36 = sphi 0, %s34
      %s37 = sphi 0, %s35
      %s38 = sphi 0, %s36
      %s39 = sphi 0, %s37
      %s51 = sphi 0, %s53
      %s54 = sphi 0, %s51
      %s55 = sphi 0, %s54
      %s71 = sphi 0, %s55
      %s77 = sphi 0, %s79
      %s80 = sphi 0, %s77
      %s81 = sphi 0, %s80
      %s97 = sphi 0, %s81
      %s101 = sphi 0, %s101
      %s103 = sphi 0, %s101
      %s104 = sphi 0, %s103
      %s118 = sphi 0, %s104
      %s122 = sphi 0, %s122
      %s124 = sphi 0, %s122
      %s125 = sphi 0, %s124
      %s139 = sphi 0, %s125
      %s143 = sphi 0, %s143
      %s145 = sphi 0, %s143
      %s146 = sphi 0, %s145
      %s160 = sphi 0, %s146
      %s164 = sphi 0, %s164
      %s166 = sphi 0, %s164
      %s167 = sphi 0, %s166
      %s181 = sphi 0, %s167
      %s185 = sphi 0, %s185
      %s187 = sphi 0, %s185
      %s188 = sphi 0, %s187
      %s202 = sphi 0, %s188
      %s206 = sphi 0, %s206
      %s208 = sphi 0, %s206
      %s209 = sphi 0, %s208
      %s223 = sphi 0, %s209
      %s227 = sphi 0, %s227
      %s229 = sphi 0, %s227
      %s230 = sphi 0, %s229
      %s244 = sphi 0, %s230
      %s248 = sphi 0, %s248
      %s250 = sphi 0, %s248
      %s251 = sphi 0, %s250
      %s265 = sphi 0, %s251
      %s269 = sphi 0, %s269
      %s271 = sphi 0, %s269
      %s272 = sphi 0, %s271
      %s286 = sphi 0, %s272
      %s290 = sphi 0, %s290
      %s292 = sphi 0, %s290
      %s293 = sphi 0, %s292
      %s307 = sphi 0, %s293
      %s311 = sphi 0, %s311
      %s313 = sphi 0, %s311
      %s314 = sphi 0, %s313
      %s328 = sphi 0, %s314
      %s332 = sphi 0, %s332
      %s334 = sphi 0, %s332
      %s335 = sphi 0, %s334
      %s349 = sphi 0, %s335
      %s353 = sphi 0, %s353
      %s355 = sphi 0, %s353
      %s356 = sphi 0, %s355
      %s370 = sphi 0, %s356
      %s374 = sphi 0, %s374
      %s376 = sphi 0, %s374
      %s377 = sphi 0, %s376
      %s391 = sphi 0, %s377
      %s399 = sphi 0, %s401
      %s402 = sphi 0, %s399
      %s403 = sphi 0, %s402
      %s419 = sphi 0, %s403
    $region4: #{tpu_custom_call.1} parent=1 // loop_header_branch
      %30 = sbr.rel (%p28) target = $region8
    $region5: #{tpu_custom_call.1} parent=1 // loop_body
      %s32 = ssub.s32 %s27, 1
      %s33 = ssub.s32 %s27, 2
      %s40 = sadd.s32 1, %s35
      %p41 = scmp.ge.s32.totalorder %s40, 1
      %s42 = scalar_select %p41, 0, %s40
      %s43 = sadd.s32 1, %s34
      %s44 = scalar_select %p41, %s43, %s34
      %p45 = scmp.ge.s32.totalorder %s44, 2
      %s46 = scalar_select %p45, 0, %s44
      %s47 = ssub.s32 %s34, %s46
      %s48 = ssub.s32 %s35, %s42
      %s49 = sor.u32 %s47, %s48
      %p50 = scmp.eq.s32.totalorder %s49, 0
      %s52 = sadd.s32 %s51, 1
      %s53 = scalar_select %p50, %s51, %s52
      %p56 = pneg %p50
      %p57 = scmp.eq.s32.totalorder %s27, 1
      %p58 = por %p56, %p57
      %p59 = scmp.ne.s32.totalorder %s51, %s54
      %p60 = scmp.eq.s32.totalorder %s27, 0
      %p61 = por %p59, %p60
      %p62 = scmp.ne.s32.totalorder %s51, %s54
      %p63 = scmp.eq.s32.totalorder %s32, 1
      %p64 = por %p62, %p63
      %p65 = scmp.ne.s32.totalorder %s54, %s55
      %p66 = scmp.eq.s32.totalorder %s32, 0
      %p67 = por %p65, %p66
      %p68 = scmp.ne.s32.totalorder %s54, %s55
      %p69 = scmp.eq.s32.totalorder %s33, 1
      %p70 = por %p68, %p69
      %p72 = scmp.ne.s32.totalorder %s55, %s71
      %p73 = scmp.eq.s32.totalorder %s33, 0
      %p74 = por %p72, %p73
      %s75 = ssub.s32 %s34, %s46
      %p76 = scmp.eq.s32.totalorder %s75, 0
      %s78 = sadd.s32 %s77, 1
      %s79 = scalar_select %p76, %s77, %s78
      %p82 = pneg %p76
      %p83 = scmp.eq.s32.totalorder %s27, 1
      %p84 = por %p82, %p83
      %p85 = scmp.ne.s32.totalorder %s77, %s80
      %p86 = scmp.eq.s32.totalorder %s27, 0
      %p87 = por %p85, %p86
      %p88 = scmp.ne.s32.totalorder %s77, %s80
      %p89 = scmp.eq.s32.totalorder %s32, 1
      %p90 = por %p88, %p89
      %p91 = scmp.ne.s32.totalorder %s80, %s81
      %p92 = scmp.eq.s32.totalorder %s32, 0
      %p93 = por %p91, %p92
      %p94 = scmp.ne.s32.totalorder %s80, %s81
      %p95 = scmp.eq.s32.totalorder %s33, 1
      %p96 = por %p94, %p95
      %p98 = scmp.ne.s32.totalorder %s81, %s97
      %p99 = scmp.eq.s32.totalorder %s33, 0
      %p100 = por %p98, %p99
      %s102 = sadd.s32 %s101, 1
      %p105 = scmp.eq.s32.totalorder %s27, 1
      %p106 = scmp.ne.s32.totalorder %s101, %s103
      %p107 = scmp.eq.s32.totalorder %s27, 0
      %p108 = por %p106, %p107
      %p109 = scmp.ne.s32.totalorder %s101, %s103
      %p110 = scmp.eq.s32.totalorder %s32, 1
      %p111 = por %p109, %p110
      %p112 = scmp.ne.s32.totalorder %s103, %s104
      %p113 = scmp.eq.s32.totalorder %s32, 0
      %p114 = por %p112, %p113
      %p115 = scmp.ne.s32.totalorder %s103, %s104
      %p116 = scmp.eq.s32.totalorder %s33, 1
      %p117 = por %p115, %p116
      %p119 = scmp.ne.s32.totalorder %s104, %s118
      %p120 = scmp.eq.s32.totalorder %s33, 0
      %p121 = por %p119, %p120
      %s123 = sadd.s32 %s122, 1
      %p126 = scmp.eq.s32.totalorder %s27, 1
      %p127 = scmp.ne.s32.totalorder %s122, %s124
      %p128 = scmp.eq.s32.totalorder %s27, 0
      %p129 = por %p127, %p128
      %p130 = scmp.ne.s32.totalorder %s122, %s124
      %p131 = scmp.eq.s32.totalorder %s32, 1
      %p132 = por %p130, %p131
      %p133 = scmp.ne.s32.totalorder %s124, %s125
      %p134 = scmp.eq.s32.totalorder %s32, 0
      %p135 = por %p133, %p134
      %p136 = scmp.ne.s32.totalorder %s124, %s125
      %p137 = scmp.eq.s32.totalorder %s33, 1
      %p138 = por %p136, %p137
      %p140 = scmp.ne.s32.totalorder %s125, %s139
      %p141 = scmp.eq.s32.totalorder %s33, 0
      %p142 = por %p140, %p141
      %s144 = sadd.s32 %s143, 1
      %p147 = scmp.eq.s32.totalorder %s27, 1
      %p148 = scmp.ne.s32.totalorder %s143, %s145
      %p149 = scmp.eq.s32.totalorder %s27, 0
      %p150 = por %p148, %p149
      %p151 = scmp.ne.s32.totalorder %s143, %s145
      %p152 = scmp.eq.s32.totalorder %s32, 1
      %p153 = por %p151, %p152
      %p154 = scmp.ne.s32.totalorder %s145, %s146
      %p155 = scmp.eq.s32.totalorder %s32, 0
      %p156 = por %p154, %p155
      %p157 = scmp.ne.s32.totalorder %s145, %s146
      %p158 = scmp.eq.s32.totalorder %s33, 1
      %p159 = por %p157, %p158
      %p161 = scmp.ne.s32.totalorder %s146, %s160
      %p162 = scmp.eq.s32.totalorder %s33, 0
      %p163 = por %p161, %p162
      %s165 = sadd.s32 %s164, 1
      %p168 = scmp.eq.s32.totalorder %s27, 1
      %p169 = scmp.ne.s32.totalorder %s164, %s166
      %p170 = scmp.eq.s32.totalorder %s27, 0
      %p171 = por %p169, %p170
      %p172 = scmp.ne.s32.totalorder %s164, %s166
      %p173 = scmp.eq.s32.totalorder %s32, 1
      %p174 = por %p172, %p173
      %p175 = scmp.ne.s32.totalorder %s166, %s167
      %p176 = scmp.eq.s32.totalorder %s32, 0
      %p177 = por %p175, %p176
      %p178 = scmp.ne.s32.totalorder %s166, %s167
      %p179 = scmp.eq.s32.totalorder %s33, 1
      %p180 = por %p178, %p179
      %p182 = scmp.ne.s32.totalorder %s167, %s181
      %p183 = scmp.eq.s32.totalorder %s33, 0
      %p184 = por %p182, %p183
      %s186 = sadd.s32 %s185, 1
      %p189 = scmp.eq.s32.totalorder %s27, 1
      %p190 = scmp.ne.s32.totalorder %s185, %s187
      %p191 = scmp.eq.s32.totalorder %s27, 0
      %p192 = por %p190, %p191
      %p193 = scmp.ne.s32.totalorder %s185, %s187
      %p194 = scmp.eq.s32.totalorder %s32, 1
      %p195 = por %p193, %p194
      %p196 = scmp.ne.s32.totalorder %s187, %s188
      %p197 = scmp.eq.s32.totalorder %s32, 0
      %p198 = por %p196, %p197
      %p199 = scmp.ne.s32.totalorder %s187, %s188
      %p200 = scmp.eq.s32.totalorder %s33, 1
      %p201 = por %p199, %p200
      %p203 = scmp.ne.s32.totalorder %s188, %s202
      %p204 = scmp.eq.s32.totalorder %s33, 0
      %p205 = por %p203, %p204
      %s207 = sadd.s32 %s206, 1
      %p210 = scmp.eq.s32.totalorder %s27, 1
      %p211 = scmp.ne.s32.totalorder %s206, %s208
      %p212 = scmp.eq.s32.totalorder %s27, 0
      %p213 = por %p211, %p212
      %p214 = scmp.ne.s32.totalorder %s206, %s208
      %p215 = scmp.eq.s32.totalorder %s32, 1
      %p216 = por %p214, %p215
      %p217 = scmp.ne.s32.totalorder %s208, %s209
      %p218 = scmp.eq.s32.totalorder %s32, 0
      %p219 = por %p217, %p218
      %p220 = scmp.ne.s32.totalorder %s208, %s209
      %p221 = scmp.eq.s32.totalorder %s33, 1
      %p222 = por %p220, %p221
      %p224 = scmp.ne.s32.totalorder %s209, %s223
      %p225 = scmp.eq.s32.totalorder %s33, 0
      %p226 = por %p224, %p225
      %s228 = sadd.s32 %s227, 1
      %p231 = scmp.eq.s32.totalorder %s27, 1
      %p232 = scmp.ne.s32.totalorder %s227, %s229
      %p233 = scmp.eq.s32.totalorder %s27, 0
      %p234 = por %p232, %p233
      %p235 = scmp.ne.s32.totalorder %s227, %s229
      %p236 = scmp.eq.s32.totalorder %s32, 1
      %p237 = por %p235, %p236
      %p238 = scmp.ne.s32.totalorder %s229, %s230
      %p239 = scmp.eq.s32.totalorder %s32, 0
      %p240 = por %p238, %p239
      %p241 = scmp.ne.s32.totalorder %s229, %s230
      %p242 = scmp.eq.s32.totalorder %s33, 1
      %p243 = por %p241, %p242
      %p245 = scmp.ne.s32.totalorder %s230, %s244
      %p246 = scmp.eq.s32.totalorder %s33, 0
      %p247 = por %p245, %p246
      %s249 = sadd.s32 %s248, 1
      %p252 = scmp.eq.s32.totalorder %s27, 1
      %p253 = scmp.ne.s32.totalorder %s248, %s250
      %p254 = scmp.eq.s32.totalorder %s27, 0
      %p255 = por %p253, %p254
      %p256 = scmp.ne.s32.totalorder %s248, %s250
      %p257 = scmp.eq.s32.totalorder %s32, 1
      %p258 = por %p256, %p257
      %p259 = scmp.ne.s32.totalorder %s250, %s251
      %p260 = scmp.eq.s32.totalorder %s32, 0
      %p261 = por %p259, %p260
      %p262 = scmp.ne.s32.totalorder %s250, %s251
      %p263 = scmp.eq.s32.totalorder %s33, 1
      %p264 = por %p262, %p263
      %p266 = scmp.ne.s32.totalorder %s251, %s265
      %p267 = scmp.eq.s32.totalorder %s33, 0
      %p268 = por %p266, %p267
      %s270 = sadd.s32 %s269, 1
      %p273 = scmp.eq.s32.totalorder %s27, 1
      %p274 = scmp.ne.s32.totalorder %s269, %s271
      %p275 = scmp.eq.s32.totalorder %s27, 0
      %p276 = por %p274, %p275
      %p277 = scmp.ne.s32.totalorder %s269, %s271
      %p278 = scmp.eq.s32.totalorder %s32, 1
      %p279 = por %p277, %p278
      %p280 = scmp.ne.s32.totalorder %s271, %s272
      %p281 = scmp.eq.s32.totalorder %s32, 0
      %p282 = por %p280, %p281
      %p283 = scmp.ne.s32.totalorder %s271, %s272
      %p284 = scmp.eq.s32.totalorder %s33, 1
      %p285 = por %p283, %p284
      %p287 = scmp.ne.s32.totalorder %s272, %s286
      %p288 = scmp.eq.s32.totalorder %s33, 0
      %p289 = por %p287, %p288
      %s291 = sadd.s32 %s290, 1
      %p294 = scmp.eq.s32.totalorder %s27, 1
      %p295 = scmp.ne.s32.totalorder %s290, %s292
      %p296 = scmp.eq.s32.totalorder %s27, 0
      %p297 = por %p295, %p296
      %p298 = scmp.ne.s32.totalorder %s290, %s292
      %p299 = scmp.eq.s32.totalorder %s32, 1
      %p300 = por %p298, %p299
      %p301 = scmp.ne.s32.totalorder %s292, %s293
      %p302 = scmp.eq.s32.totalorder %s32, 0
      %p303 = por %p301, %p302
      %p304 = scmp.ne.s32.totalorder %s292, %s293
      %p305 = scmp.eq.s32.totalorder %s33, 1
      %p306 = por %p304, %p305
      %p308 = scmp.ne.s32.totalorder %s293, %s307
      %p309 = scmp.eq.s32.totalorder %s33, 0
      %p310 = por %p308, %p309
      %s312 = sadd.s32 %s311, 1
      %p315 = scmp.eq.s32.totalorder %s27, 1
      %p316 = scmp.ne.s32.totalorder %s311, %s313
      %p317 = scmp.eq.s32.totalorder %s27, 0
      %p318 = por %p316, %p317
      %p319 = scmp.ne.s32.totalorder %s311, %s313
      %p320 = scmp.eq.s32.totalorder %s32, 1
      %p321 = por %p319, %p320
      %p322 = scmp.ne.s32.totalorder %s313, %s314
      %p323 = scmp.eq.s32.totalorder %s32, 0
      %p324 = por %p322, %p323
      %p325 = scmp.ne.s32.totalorder %s313, %s314
      %p326 = scmp.eq.s32.totalorder %s33, 1
      %p327 = por %p325, %p326
      %p329 = scmp.ne.s32.totalorder %s314, %s328
      %p330 = scmp.eq.s32.totalorder %s33, 0
      %p331 = por %p329, %p330
      %s333 = sadd.s32 %s332, 1
      %p336 = scmp.eq.s32.totalorder %s27, 1
      %p337 = scmp.ne.s32.totalorder %s332, %s334
      %p338 = scmp.eq.s32.totalorder %s27, 0
      %p339 = por %p337, %p338
      %p340 = scmp.ne.s32.totalorder %s332, %s334
      %p341 = scmp.eq.s32.totalorder %s32, 1
      %p342 = por %p340, %p341
      %p343 = scmp.ne.s32.totalorder %s334, %s335
      %p344 = scmp.eq.s32.totalorder %s32, 0
      %p345 = por %p343, %p344
      %p346 = scmp.ne.s32.totalorder %s334, %s335
      %p347 = scmp.eq.s32.totalorder %s33, 1
      %p348 = por %p346, %p347
      %p350 = scmp.ne.s32.totalorder %s335, %s349
      %p351 = scmp.eq.s32.totalorder %s33, 0
      %p352 = por %p350, %p351
      %s354 = sadd.s32 %s353, 1
      %p357 = scmp.eq.s32.totalorder %s27, 1
      %p358 = scmp.ne.s32.totalorder %s353, %s355
      %p359 = scmp.eq.s32.totalorder %s27, 0
      %p360 = por %p358, %p359
      %p361 = scmp.ne.s32.totalorder %s353, %s355
      %p362 = scmp.eq.s32.totalorder %s32, 1
      %p363 = por %p361, %p362
      %p364 = scmp.ne.s32.totalorder %s355, %s356
      %p365 = scmp.eq.s32.totalorder %s32, 0
      %p366 = por %p364, %p365
      %p367 = scmp.ne.s32.totalorder %s355, %s356
      %p368 = scmp.eq.s32.totalorder %s33, 1
      %p369 = por %p367, %p368
      %p371 = scmp.ne.s32.totalorder %s356, %s370
      %p372 = scmp.eq.s32.totalorder %s33, 0
      %p373 = por %p371, %p372
      %s375 = sadd.s32 %s374, 1
      %p378 = scmp.eq.s32.totalorder %s27, 1
      %p379 = scmp.ne.s32.totalorder %s374, %s376
      %p380 = scmp.eq.s32.totalorder %s27, 0
      %p381 = por %p379, %p380
      %p382 = scmp.ne.s32.totalorder %s374, %s376
      %p383 = scmp.eq.s32.totalorder %s32, 1
      %p384 = por %p382, %p383
      %p385 = scmp.ne.s32.totalorder %s376, %s377
      %p386 = scmp.eq.s32.totalorder %s32, 0
      %p387 = por %p385, %p386
      %p388 = scmp.ne.s32.totalorder %s376, %s377
      %p389 = scmp.eq.s32.totalorder %s33, 1
      %p390 = por %p388, %p389
      %p392 = scmp.ne.s32.totalorder %s377, %s391
      %p393 = scmp.eq.s32.totalorder %s33, 0
      %p394 = por %p392, %p393
      %s395 = ssub.s32 %s34, %s46
      %s396 = ssub.s32 %s35, %s42
      %s397 = sor.u32 %s395, %s396
      %p398 = scmp.eq.s32.totalorder %s397, 0
      %s400 = sadd.s32 %s399, 1
      %s401 = scalar_select %p398, %s399, %s400
      %p404 = pneg %p398
      %p405 = scmp.eq.s32.totalorder %s27, 1
      %p406 = por %p404, %p405
      %p407 = scmp.ne.s32.totalorder %s399, %s402
      %p408 = scmp.eq.s32.totalorder %s27, 0
      %p409 = por %p407, %p408
      %p410 = scmp.ne.s32.totalorder %s399, %s402
      %p411 = scmp.eq.s32.totalorder %s32, 1
      %p412 = por %p410, %p411
      %p413 = scmp.ne.s32.totalorder %s402, %s403
      %p414 = scmp.eq.s32.totalorder %s32, 0
      %p415 = por %p413, %p414
      %p416 = scmp.ne.s32.totalorder %s402, %s403
      %p417 = scmp.eq.s32.totalorder %s33, 1
      %p418 = por %p416, %p417
      %p420 = scmp.ne.s32.totalorder %s403, %s419
      %p421 = scmp.eq.s32.totalorder %s33, 0
      %p422 = por %p420, %p421
      %p423 = scmp.le.s32.totalorder 1, %s27
      %p424 = scmp.lt.s32.totalorder %s27, 3
      %p425 = pnand %p423, %p424
      %p426 = pneg %p425
      // Predicated region
      $region9: #{tpu_custom_call.1} parent=5 // pred_check
        _
      $region10: #{tpu_custom_call.1} parent=5 // pred_check_branch
        %428 = sbr.rel (%p425) target = $region12
      $region11: #{tpu_custom_call.1} parent=5 // pred_region
        %s429 = ssub.s32 %s27, 1
        // Predicated region
        $region13: #{tpu_custom_call.1} parent=11 // pred_check
          %p430 = pneg %p114
        $region14: #{tpu_custom_call.1} parent=11 // pred_check_branch
          %432 = sbr.rel (%p430) target = $region16
        $region15: #{tpu_custom_call.1} parent=11 // pred_region
          _
        $region16: #{tpu_custom_call.1} parent=11 // pred_fallthru
          _
        // Predicated region
        $region17: #{tpu_custom_call.1} parent=11 // pred_check
          %p433 = pneg %p135
        $region18: #{tpu_custom_call.1} parent=11 // pred_check_branch
          %435 = sbr.rel (%p433) target = $region20
        $region19: #{tpu_custom_call.1} parent=11 // pred_region
          _
        $region20: #{tpu_custom_call.1} parent=11 // pred_fallthru
          _
        // Predicated region
        $region21: #{tpu_custom_call.1} parent=11 // pred_check
          %p436 = pneg %p156
        $region22: #{tpu_custom_call.1} parent=11 // pred_check_branch
          %438 = sbr.rel (%p436) target = $region24
        $region23: #{tpu_custom_call.1} parent=11 // pred_region
          _
        $region24: #{tpu_custom_call.1} parent=11 // pred_fallthru
          _
        // Predicated region
        $region25: #{tpu_custom_call.1} parent=11 // pred_check
          %p439 = pneg %p177
        $region26: #{tpu_custom_call.1} parent=11 // pred_check_branch
          %441 = sbr.rel (%p439) target = $region28
        $region27: #{tpu_custom_call.1} parent=11 // pred_region
          _
        $region28: #{tpu_custom_call.1} parent=11 // pred_fallthru
          _
        // Predicated region
        $region29: #{tpu_custom_call.1} parent=11 // pred_check
          %p442 = pneg %p198
        $region30: #{tpu_custom_call.1} parent=11 // pred_check_branch
          %444 = sbr.rel (%p442) target = $region32
        $region31: #{tpu_custom_call.1} parent=11 // pred_region
          _
        $region32: #{tpu_custom_call.1} parent=11 // pred_fallthru
          _
        // Predicated region
        $region33: #{tpu_custom_call.1} parent=11 // pred_check
          %p445 = pneg %p219
        $region34: #{tpu_custom_call.1} parent=11 // pred_check_branch
          %447 = sbr.rel (%p445) target = $region36
        $region35: #{tpu_custom_call.1} parent=11 // pred_region
          %s449 = ssub.s32 16, 16
          %450 = vsyncadd [#allocation4], %s449
          %s452 = sshll.u32 [#allocation3], 4
          %s453 = int_to_ptr.vmem [resolvable:$true] %s452
          %455 = dma.hbm_to_vmem [thread:$0]  %s7, 16, %s453, [#allocation4]
        $region36: #{tpu_custom_call.1} parent=11 // pred_fallthru
          _
        // Predicated region
        $region37: #{tpu_custom_call.1} parent=11 // pred_check
          %p456 = pneg %p240
        $region38: #{tpu_custom_call.1} parent=11 // pred_check_branch
          %458 = sbr.rel (%p456) target = $region40
        $region39: #{tpu_custom_call.1} parent=11 // pred_region
          %s460 = ssub.s32 16, 16
          %461 = vsyncadd [#allocation7], %s460
          %s463 = sshll.u32 [#allocation6], 4
          %s464 = int_to_ptr.vmem [resolvable:$true] %s463
          %466 = dma.hbm_to_vmem [thread:$0]  %s8, 16, %s464, [#allocation7]
        $region40: #{tpu_custom_call.1} parent=11 // pred_fallthru
          _
        // Predicated region
        $region41: #{tpu_custom_call.1} parent=11 // pred_check
          %p467 = pneg %p261
        $region42: #{tpu_custom_call.1} parent=11 // pred_check_branch
          %469 = sbr.rel (%p467) target = $region44
        $region43: #{tpu_custom_call.1} parent=11 // pred_region
          %s471 = ssub.s32 16, 16
          %472 = vsyncadd [#allocation7], %s471
          %s474 = sshll.u32 [#allocation8], 4
          %s475 = int_to_ptr.vmem [resolvable:$true] %s474
          %477 = dma.hbm_to_vmem [thread:$0]  %s9, 16, %s475, [#allocation7]
        $region44: #{tpu_custom_call.1} parent=11 // pred_fallthru
          _
        // Predicated region
        $region45: #{tpu_custom_call.1} parent=11 // pred_check
          %p478 = pneg %p282
        $region46: #{tpu_custom_call.1} parent=11 // pred_check_branch
          %480 = sbr.rel (%p478) target = $region48
        $region47: #{tpu_custom_call.1} parent=11 // pred_region
          _
        $region48: #{tpu_custom_call.1} parent=11 // pred_fallthru
          _
        // Predicated region
        $region49: #{tpu_custom_call.1} parent=11 // pred_check
          %p481 = pneg %p303
        $region50: #{tpu_custom_call.1} parent=11 // pred_check_branch
          %483 = sbr.rel (%p481) target = $region52
        $region51: #{tpu_custom_call.1} parent=11 // pred_region
          _
        $region52: #{tpu_custom_call.1} parent=11 // pred_fallthru
          _
        // Predicated region
        $region53: #{tpu_custom_call.1} parent=11 // pred_check
          %p484 = pneg %p324
        $region54: #{tpu_custom_call.1} parent=11 // pred_check_branch
          %486 = sbr.rel (%p484) target = $region56
        $region55: #{tpu_custom_call.1} parent=11 // pred_region
          _
        $region56: #{tpu_custom_call.1} parent=11 // pred_fallthru
          _
        // Predicated region
        $region57: #{tpu_custom_call.1} parent=11 // pred_check
          %p487 = pneg %p345
        $region58: #{tpu_custom_call.1} parent=11 // pred_check_branch
          %489 = sbr.rel (%p487) target = $region60
        $region59: #{tpu_custom_call.1} parent=11 // pred_region
          _
        $region60: #{tpu_custom_call.1} parent=11 // pred_fallthru
          _
        // Predicated region
        $region61: #{tpu_custom_call.1} parent=11 // pred_check
          %p490 = pneg %p366
        $region62: #{tpu_custom_call.1} parent=11 // pred_check_branch
          %492 = sbr.rel (%p490) target = $region64
        $region63: #{tpu_custom_call.1} parent=11 // pred_region
          _
        $region64: #{tpu_custom_call.1} parent=11 // pred_fallthru
          _
        // Predicated region
        $region65: #{tpu_custom_call.1} parent=11 // pred_check
          %p493 = pneg %p387
        $region66: #{tpu_custom_call.1} parent=11 // pred_check_branch
          %495 = sbr.rel (%p493) target = $region68
        $region67: #{tpu_custom_call.1} parent=11 // pred_region
          _
        $region68: #{tpu_custom_call.1} parent=11 // pred_fallthru
          _
      $region12: #{tpu_custom_call.1} parent=5 // pred_fallthru
        _
      %p496 = scmp.lt.s32.totalorder %s27, 2
      // Predicated region
      $region69: #{tpu_custom_call.1} parent=5 // pred_check
        %p497 = pneg %p496
      $region70: #{tpu_custom_call.1} parent=5 // pred_check_branch
        %499 = sbr.rel (%p497) target = $region72
      $region71: #{tpu_custom_call.1} parent=5 // pred_region
        // Predicated region
        $region73: #{tpu_custom_call.1} parent=71 // pred_check
          %p500 = pneg %p61
        $region74: #{tpu_custom_call.1} parent=71 // pred_check_branch
          %502 = sbr.rel (%p500) target = $region76
        $region75: #{tpu_custom_call.1} parent=71 // pred_region
          %p503 = scmp.lt.s32.totalorder %s34, 1
          %s504 = scalar_select %p503, %s34, 1
          %p505 = scmp.lt.s32.totalorder %s35, 0
          %s506 = scalar_select %p505, %s35, 0
          %s507 = sadd.s32 %s506, %s504
          %s508 = smul.addr %s507, 8
          %s509 = scalar_lea.vmem %s0, %s508
        $region76: #{tpu_custom_call.1} parent=71 // pred_fallthru
          _
        // Predicated region
        $region77: #{tpu_custom_call.1} parent=71 // pred_check
          %p510 = pneg %p87
        $region78: #{tpu_custom_call.1} parent=71 // pred_check_branch
          %512 = sbr.rel (%p510) target = $region80
        $region79: #{tpu_custom_call.1} parent=71 // pred_region
          %p513 = scmp.lt.s32.totalorder %s34, 1
          %s514 = scalar_select %p513, %s34, 1
          %s515 = smul.addr %s514, 2
          %s516 = smul.addr %s515, 4
          %s517 = scalar_lea.vmem %s1, %s516
        $region80: #{tpu_custom_call.1} parent=71 // pred_fallthru
          _
      $region72: #{tpu_custom_call.1} parent=5 // pred_fallthru
        _
      %p518 = scmp.le.s32.totalorder 1, %s27
      %p519 = scmp.lt.s32.totalorder %s27, 3
      %p520 = pnand %p518, %p519
      %p521 = pneg %p520
      // Predicated region
      $region81: #{tpu_custom_call.1} parent=5 // pred_check
        _
      $region82: #{tpu_custom_call.1} parent=5 // pred_check_branch
        %523 = sbr.rel (%p520) target = $region84
      $region83: #{tpu_custom_call.1} parent=5 // pred_region
        %s524 = ssub.s32 %s27, 1
        // Predicated region
        $region85: #{tpu_custom_call.1} parent=83 // pred_check
          %p525 = pneg %p219
        $region86: #{tpu_custom_call.1} parent=83 // pred_check_branch
          %527 = sbr.rel (%p525) target = $region88
        $region87: #{tpu_custom_call.1} parent=83 // pred_region
          %528 = dma.done [#allocation4], 16
        $region88: #{tpu_custom_call.1} parent=83 // pred_fallthru
          _
        // Predicated region
        $region89: #{tpu_custom_call.1} parent=83 // pred_check
          %p529 = pneg %p240
        $region90: #{tpu_custom_call.1} parent=83 // pred_check_branch
          %531 = sbr.rel (%p529) target = $region92
        $region91: #{tpu_custom_call.1} parent=83 // pred_region
          %532 = dma.done [#allocation7], 16
        $region92: #{tpu_custom_call.1} parent=83 // pred_fallthru
          _
        // Predicated region
        $region93: #{tpu_custom_call.1} parent=83 // pred_check
          %p533 = pneg %p261
        $region94: #{tpu_custom_call.1} parent=83 // pred_check_branch
          %535 = sbr.rel (%p533) target = $region96
        $region95: #{tpu_custom_call.1} parent=83 // pred_region
          %536 = dma.done [#allocation7], 16
        $region96: #{tpu_custom_call.1} parent=83 // pred_fallthru
          _
        %p537 = scmp.lt.s32.totalorder %s36, 1
        %s538 = scalar_select %p537, %s36, 1
        %p539 = scmp.lt.s32.totalorder %s37, 0
        %s540 = scalar_select %p539, %s37, 0
        %s541 = sadd.s32 %s540, %s538
        %s542 = smul.addr %s541, 8
        %s543 = scalar_lea.vmem %s0, %s542
        %p544 = pneg %p67
        %p545 = pneg %p64
        %p546 = scmp.lt.s32.totalorder %s36, 1
        %s547 = scalar_select %p546, %s36, 1
        %s548 = smul.addr %s547, 2
        %s549 = smul.addr %s548, 4
        %s550 = scalar_lea.vmem %s1, %s549
        %p551 = pneg %p93
        %p552 = pneg %p90
        %p553 = pneg %p114
        %p554 = pneg %p111
        %p555 = pneg %p135
        %p556 = pneg %p132
        %p557 = pneg %p156
        %p558 = pneg %p153
        %p559 = pneg %p177
        %p560 = pneg %p174
        %p561 = pneg %p198
        %p562 = pneg %p195
        %p563 = pneg %p219
        %p564 = pneg %p216
        %p565 = pneg %p240
        %p566 = pneg %p237
        %p567 = pneg %p261
        %p568 = pneg %p258
        %p569 = pneg %p282
        %p570 = pneg %p279
        %p571 = pneg %p303
        %p572 = pneg %p300
        %p573 = pneg %p324
        %p574 = pneg %p321
        %p575 = pneg %p345
        %p576 = pneg %p342
        %p577 = pneg %p366
        %p578 = pneg %p363
        %p579 = pneg %p387
        %p580 = pneg %p384
        %p581 = pneg %p415
        %p582 = pneg %p412
        %s583 = sand.u32 %s402, 1
        %s584 = scalar_lea.sflag [#allocation5], %s583
        %s585 = sand.u32 %s402, 1
        %s586 = smul.addr %s585, 8
        %s587 = scalar_lea.vmem [#allocation9], %s586
        %p588 = scmp.lt.s32.totalorder %s36, 1
        %s589 = scalar_select %p588, %s36, 1
        %p590 = scmp.lt.s32.totalorder %s37, 0
        %s591 = scalar_select %p590, %s37, 0
        %s592 = sadd.s32 %s591, %s589
        %s593 = smul.addr %s592, 8
        %s594 = scalar_lea.vmem %s0, %s593
        %p595 = scmp.lt.s32.totalorder %s36, 1
        %s596 = scalar_select %p595, %s36, 1
        %s597 = smul.addr %s596, 2
        %s598 = smul.addr %s597, 4
        %s599 = scalar_lea.vmem %s1, %s598
        %p601 = scmp.eq.s32.totalorder %s37, 0
        // Predicated region
        $region97: #{tpu_custom_call.1} parent=83 // pred_check
          %p602 = pneg %p601
        $region98: #{tpu_custom_call.1} parent=83 // pred_check_branch
          %604 = sbr.rel (%p602) target = $region100
        $region99: #{tpu_custom_call.1} parent=83 // pred_region
          %v605 = vld [vmem:[%s599] sm:$0xf]
          %v606 = vld [vmem:[%s599 + $0x4] sm:$0xf]
          %v607 = vld [vmem:[%s4] sm:$0xf]
          %v608 = vld [vmem:[%s4 + $0x4] sm:$0xf]
          %v609 = vld [vmem:[%s4 + $0x8] sm:$0xf]
          %v610 = vld [vmem:[%s4 + $0xc] sm:$0xf]
          %v611 = vld [vmem:[%s5] sm:$0x1]
          %v613 = vlaneseq
          %v614 = vshrl.u32 %v613, 7
          %v615 = vsub.s32 0, %v614
          %v616 = vrot.slane %v611, %v615
          %v620 = vunpack.c.l.b16 %v605
          %v621 = vunpack.c.l.b16 %v606
          %v622 = vpack.c.b16 %v621, %v620
          %v627 = vunpack.c.l.b16 %v607
          %v628 = vunpack.c.l.b16 %v608
          %v629 = vunpack.c.l.b16 %v609
          %v630 = vunpack.c.l.b16 %v610
          %v631 = vpack.c.b16 %v628, %v627
          %v632 = vpack.c.b16 %v630, %v629
          %vm635 = vcmask 261120
          %v637 = vsel %vm635, %v622, 0
          %639 = vmatprep.subr.bf16.mxu0 0
          %640 = vmatpush1.bf16.msra.mxu0 %v631
          %641 = vmatprep.subr.bf16.mxu0 0
          %642 = vmatpush1.bf16.msra.mxu0 %v632
          %643 = vmatprep.subr.bf16.mxu0 0
          %644 = vmatpush1.bf16.msra.mxu0 0
          %645 = vmatprep.subr.bf16.mxu0 0
          %646 = vmatpush1.bf16.msra.mxu0 0
          %647 = vmatprep.subr.bf16.mxu0 0
          %648 = vmatpush1.bf16.msra.mxu0 0
          %649 = vmatprep.subr.bf16.mxu0 0
          %650 = vmatpush1.bf16.msra.mxu0 0
          %651 = vmatprep.subr.bf16.mxu0 0
          %652 = vmatpush1.bf16.msra.mxu0 0
          %653 = vmatprep.subr.bf16.mxu0 0
          %654 = vmatpush1.bf16.msra.mxu0 0
          %655 = vmatprep.subr.bf16.mxu0 0
          %656 = vmatpush1.bf16.msra.mxu0 0
          %657 = vmatprep.subr.bf16.mxu0 0
          %658 = vmatpush1.bf16.msra.mxu0 0
          %659 = vmatprep.subr.bf16.mxu0 0
          %660 = vmatpush1.bf16.msra.mxu0 0
          %661 = vmatprep.subr.bf16.mxu0 0
          %662 = vmatpush1.bf16.msra.mxu0 0
          %663 = vmatprep.subr.bf16.mxu0 0
          %664 = vmatpush1.bf16.msra.mxu0 0
          %665 = vmatprep.subr.bf16.mxu0 0
          %666 = vmatpush1.bf16.msra.mxu0 0
          %667 = vmatprep.subr.bf16.mxu0 0
          %668 = vmatpush1.bf16.msra.mxu0 0
          %669 = vmatprep.subr.bf16.mxu0 0
          %670 = vmatpush1.bf16.msra.mxu0 0
          %671 = vmatprep.mubr.bf16.mxu0 0
          %672 = vmatmul.mubr.bf16.gmra.mrb[0].mxu0 %v637
          %v673 = vpop.f32.mrb[0].mxu0
          %v674 = vadd.f32 %v616, %v673
          %v675 = vpop.f32.mrb[0].mxu0
          %v676 = vpop.f32.mrb[0].mxu0
          %v677 = vadd.f32 %v616, %v676
          %v678 = vpop.f32.mrb[0].mxu0
          %679 = vdwg.mxu0
          %v680 = vpack.c.bf16 %v677, %v674
          %vm681 = vcmask 523264
          %682 = vst.msk [vmem:[#allocation2] sm:$0xff] %vm681, %v680
        $region100: #{tpu_custom_call.1} parent=83 // pred_fallthru
          _
        %v683 = vld [vmem:[%s594] sm:$0xff]
        %v684 = vpack.c.bf16 %v683, %v683
        %v685 = vld [vmem:[%s2] sm:$0xf]
        %v686 = vld [vmem:[%s2 + $0x4] sm:$0xf]
        %v687 = vld [vmem:[%s2 + $0x8] sm:$0xf]
        %v688 = vld [vmem:[%s2 + $0xc] sm:$0xf]
        %v689 = vld [vmem:[%s3] sm:$0x1]
        %v691 = vlaneseq
        %v692 = vshrl.u32 %v691, 7
        %v693 = vsub.s32 0, %v692
        %v694 = vrot.slane %v689, %v693
        %v700 = vunpack.c.l.b16 %v685
        %v701 = vunpack.c.l.b16 %v686
        %v702 = vunpack.c.l.b16 %v687
        %v703 = vunpack.c.l.b16 %v688
        %v704 = vpack.c.b16 %v701, %v700
        %v705 = vpack.c.b16 %v703, %v702
        %vm708 = vcmask 261120
        %v710 = vsel %vm708, %v684, 0
        %712 = vmatprep.subr.bf16.mxu0 0
        %713 = vmatpush1.bf16.msra.mxu0 %v704
        %714 = vmatprep.subr.bf16.mxu0 0
        %715 = vmatpush1.bf16.msra.mxu0 %v705
        %716 = vmatprep.subr.bf16.mxu0 0
        %717 = vmatpush1.bf16.msra.mxu0 0
        %718 = vmatprep.subr.bf16.mxu0 0
        %719 = vmatpush1.bf16.msra.mxu0 0
        %720 = vmatprep.subr.bf16.mxu0 0
        %721 = vmatpush1.bf16.msra.mxu0 0
        %722 = vmatprep.subr.bf16.mxu0 0
        %723 = vmatpush1.bf16.msra.mxu0 0
        %724 = vmatprep.subr.bf16.mxu0 0
        %725 = vmatpush1.bf16.msra.mxu0 0
        %726 = vmatprep.subr.bf16.mxu0 0
        %727 = vmatpush1.bf16.msra.mxu0 0
        %728 = vmatprep.subr.bf16.mxu0 0
        %729 = vmatpush1.bf16.msra.mxu0 0
        %730 = vmatprep.subr.bf16.mxu0 0
        %731 = vmatpush1.bf16.msra.mxu0 0
        %732 = vmatprep.subr.bf16.mxu0 0
        %733 = vmatpush1.bf16.msra.mxu0 0
        %734 = vmatprep.subr.bf16.mxu0 0
        %735 = vmatpush1.bf16.msra.mxu0 0
        %736 = vmatprep.subr.bf16.mxu0 0
        %737 = vmatpush1.bf16.msra.mxu0 0
        %738 = vmatprep.subr.bf16.mxu0 0
        %739 = vmatpush1.bf16.msra.mxu0 0
        %740 = vmatprep.subr.bf16.mxu0 0
        %741 = vmatpush1.bf16.msra.mxu0 0
        %742 = vmatprep.subr.bf16.mxu0 0
        %743 = vmatpush1.bf16.msra.mxu0 0
        %744 = vmatprep.mubr.bf16.mxu0 0
        %745 = vmatmul.mubr.bf16.gmra.mrb[0].mxu0 %v710
        %v746 = vpop.f32.mrb[0].mxu0
        %v747 = vadd.f32 %v694, %v746
        %v748 = vpop.f32.mrb[0].mxu0
        %v749 = vpop.f32.mrb[0].mxu0
        %v750 = vpop.f32.mrb[0].mxu0
        %751 = vdwg.mxu0
        %v752 = vpack.c.bf16 %v747, %v747
        %v753 = vld [vmem:[#allocation2] sm:$0xff]
        %vm754 = vcmask 64512
        %v756 = vsel %vm754, %v752, 0
        %v759 = vsel %vm754, %v753, 0
        %761 = vmatprep.subr.bf16.mxu0 0
        %762 = vmatpush1.bf16.xpose.msra.mxu0 %v759
        %763 = vmatprep.subr.bf16.mxu0 0
        %764 = vmatpush1.bf16.xpose.msra.mxu0 0
        %765 = vmatprep.subr.bf16.mxu0 0
        %766 = vmatpush1.bf16.xpose.msra.mxu0 0
        %767 = vmatprep.subr.bf16.mxu0 0
        %768 = vmatpush1.bf16.xpose.msra.mxu0 0
        %769 = vmatprep.subr.bf16.mxu0 0
        %770 = vmatpush1.bf16.xpose.msra.mxu0 0
        %771 = vmatprep.subr.bf16.mxu0 0
        %772 = vmatpush1.bf16.xpose.msra.mxu0 0
        %773 = vmatprep.subr.bf16.mxu0 0
        %774 = vmatpush1.bf16.xpose.msra.mxu0 0
        %775 = vmatprep.subr.bf16.mxu0 0
        %776 = vmatpush1.bf16.xpose.msra.mxu0 0
        %777 = vmatprep.subr.bf16.mxu0 0
        %778 = vmatpush1.bf16.xpose.msra.mxu0 0
        %779 = vmatprep.subr.bf16.mxu0 0
        %780 = vmatpush1.bf16.xpose.msra.mxu0 0
        %781 = vmatprep.subr.bf16.mxu0 0
        %782 = vmatpush1.bf16.xpose.msra.mxu0 0
        %783 = vmatprep.subr.bf16.mxu0 0
        %784 = vmatpush1.bf16.xpose.msra.mxu0 0
        %785 = vmatprep.subr.bf16.mxu0 0
        %786 = vmatpush1.bf16.xpose.msra.mxu0 0
        %787 = vmatprep.subr.bf16.mxu0 0
        %788 = vmatpush1.bf16.xpose.msra.mxu0 0
        %789 = vmatprep.subr.bf16.mxu0 0
        %790 = vmatpush1.bf16.xpose.msra.mxu0 0
        %791 = vmatprep.subr.bf16.mxu0 0
        %792 = vmatpush1.bf16.xpose.msra.mxu0 0
        %793 = vmatprep.mubr.bf16.mxu0 0
        %794 = vmatmul.mubr.bf16.gmra.mrb[0].mxu0 %v756
        %v795 = vpop.f32.mrb[0].mxu0
        %v796 = vadd.f32 0.0, %v795
        %v797 = vpop.f32.mrb[0].mxu0
        %v798 = vpop.f32.mrb[0].mxu0
        %v799 = vpop.f32.mrb[0].mxu0
        %800 = vdwg.mxu0
        %vm801 = vcmask 130048
        %v802 = vsel %vm801, %v796, -inf
        %803 = vmax.xlane.f32.xlu0 %v802
        %v804 = vpop.xlane.xlu0 %803
        %v805 = vsub.f32 %v796, %v804
        %v806 = vmul.f32 %v805, 1.442695
        %v807 = vpow.pop %v806
        %v808 = vsel %vm801, %v807, 0.0
        %809 = vadd.xlane.f32.xlu0 %v808
        %v810 = vpop.xlane.xlu0 %809
        %v811 = vrcp.pop %v810
        %v812 = vmul.f32 %v807, %v811
        %v813 = vpack.c.bf16 %v812, %v812
        %815 = vrot.lane.b32.xlu0 %v753, 96
        %v816 = vpop.permute.xlu0 %815
        %v819 = vsel %vm801, %v813, 0
        %821 = vmatprep.subr.bf16.mxu0 0
        %822 = vmatpush1.bf16.msra.mxu0 %v816
        %823 = vmatprep.subr.bf16.mxu0 0
        %824 = vmatpush1.bf16.msra.mxu0 0
        %825 = vmatprep.subr.bf16.mxu0 0
        %826 = vmatpush1.bf16.msra.mxu0 0
        %827 = vmatprep.subr.bf16.mxu0 0
        %828 = vmatpush1.bf16.msra.mxu0 0
        %829 = vmatprep.subr.bf16.mxu0 0
        %830 = vmatpush1.bf16.msra.mxu0 0
        %831 = vmatprep.subr.bf16.mxu0 0
        %832 = vmatpush1.bf16.msra.mxu0 0
        %833 = vmatprep.subr.bf16.mxu0 0
        %834 = vmatpush1.bf16.msra.mxu0 0
        %835 = vmatprep.subr.bf16.mxu0 0
        %836 = vmatpush1.bf16.msra.mxu0 0
        %837 = vmatprep.subr.bf16.mxu0 0
        %838 = vmatpush1.bf16.msra.mxu0 0
        %839 = vmatprep.subr.bf16.mxu0 0
        %840 = vmatpush1.bf16.msra.mxu0 0
        %841 = vmatprep.subr.bf16.mxu0 0
        %842 = vmatpush1.bf16.msra.mxu0 0
        %843 = vmatprep.subr.bf16.mxu0 0
        %844 = vmatpush1.bf16.msra.mxu0 0
        %845 = vmatprep.subr.bf16.mxu0 0
        %846 = vmatpush1.bf16.msra.mxu0 0
        %847 = vmatprep.subr.bf16.mxu0 0
        %848 = vmatpush1.bf16.msra.mxu0 0
        %849 = vmatprep.subr.bf16.mxu0 0
        %850 = vmatpush1.bf16.msra.mxu0 0
        %851 = vmatprep.subr.bf16.mxu0 0
        %852 = vmatpush1.bf16.msra.mxu0 0
        %853 = vmatprep.mubr.bf16.mxu0 0
        %854 = vmatmul.mubr.bf16.gmra.mrb[0].mxu0 %v819
        %v855 = vpop.f32.mrb[0].mxu0
        %v856 = vadd.f32 0.0, %v855
        %v857 = vpop.f32.mrb[0].mxu0
        %v858 = vpop.f32.mrb[0].mxu0
        %v859 = vpop.f32.mrb[0].mxu0
        %860 = vdwg.mxu0
        %v861 = vpack.c.bf16 %v856, %v856
        %863 = vrot.lane.b32.xlu0 %v752, 120
        %v864 = vpop.permute.xlu0 %863
        %865 = vrot.lane.b32.xlu0 %v753, 120
        %v866 = vpop.permute.xlu0 %865
        %v868 = vsel %vm754, %v864, 0
        %v871 = vsel %vm754, %v866, 0
        %873 = vmatprep.subr.bf16.mxu0 0
        %874 = vmatpush1.bf16.xpose.msra.mxu0 %v871
        %875 = vmatprep.subr.bf16.mxu0 0
        %876 = vmatpush1.bf16.xpose.msra.mxu0 0
        %877 = vmatprep.subr.bf16.mxu0 0
        %878 = vmatpush1.bf16.xpose.msra.mxu0 0
        %879 = vmatprep.subr.bf16.mxu0 0
        %880 = vmatpush1.bf16.xpose.msra.mxu0 0
        %881 = vmatprep.subr.bf16.mxu0 0
        %882 = vmatpush1.bf16.xpose.msra.mxu0 0
        %883 = vmatprep.subr.bf16.mxu0 0
        %884 = vmatpush1.bf16.xpose.msra.mxu0 0
        %885 = vmatprep.subr.bf16.mxu0 0
        %886 = vmatpush1.bf16.xpose.msra.mxu0 0
        %887 = vmatprep.subr.bf16.mxu0 0
        %888 = vmatpush1.bf16.xpose.msra.mxu0 0
        %889 = vmatprep.subr.bf16.mxu0 0
        %890 = vmatpush1.bf16.xpose.msra.mxu0 0
        %891 = vmatprep.subr.bf16.mxu0 0
        %892 = vmatpush1.bf16.xpose.msra.mxu0 0
        %893 = vmatprep.subr.bf16.mxu0 0
        %894 = vmatpush1.bf16.xpose.msra.mxu0 0
        %895 = vmatprep.subr.bf16.mxu0 0
        %896 = vmatpush1.bf16.xpose.msra.mxu0 0
        %897 = vmatprep.subr.bf16.mxu0 0
        %898 = vmatpush1.bf16.xpose.msra.mxu0 0
        %899 = vmatprep.subr.bf16.mxu0 0
        %900 = vmatpush1.bf16.xpose.msra.mxu0 0
        %901 = vmatprep.subr.bf16.mxu0 0
        %902 = vmatpush1.bf16.xpose.msra.mxu0 0
        %903 = vmatprep.subr.bf16.mxu0 0
        %904 = vmatpush1.bf16.xpose.msra.mxu0 0
        %905 = vmatprep.mubr.bf16.mxu0 0
        %906 = vmatmul.mubr.bf16.gmra.mrb[0].mxu0 %v868
        %v907 = vpop.f32.mrb[0].mxu0
        %v908 = vadd.f32 0.0, %v907
        %v909 = vpop.f32.mrb[0].mxu0
        %v910 = vpop.f32.mrb[0].mxu0
        %v911 = vpop.f32.mrb[0].mxu0
        %912 = vdwg.mxu0
        %v913 = vsel %vm801, %v908, -inf
        %914 = vmax.xlane.f32.xlu0 %v913
        %v915 = vpop.xlane.xlu0 %914
        %v916 = vsub.f32 %v908, %v915
        %v917 = vmul.f32 %v916, 1.442695
        %v918 = vpow.pop %v917
        %v919 = vsel %vm801, %v918, 0.0
        %920 = vadd.xlane.f32.xlu0 %v919
        %v921 = vpop.xlane.xlu0 %920
        %v922 = vrcp.pop %v921
        %v923 = vmul.f32 %v918, %v922
        %v924 = vpack.c.bf16 %v923, %v923
        %925 = vrot.lane.b32.xlu0 %v753, 88
        %v926 = vpop.permute.xlu0 %925
        %v929 = vsel %vm801, %v924, 0
        %931 = vmatprep.subr.bf16.mxu0 0
        %932 = vmatpush1.bf16.msra.mxu0 %v926
        %933 = vmatprep.subr.bf16.mxu0 0
        %934 = vmatpush1.bf16.msra.mxu0 0
        %935 = vmatprep.subr.bf16.mxu0 0
        %936 = vmatpush1.bf16.msra.mxu0 0
        %937 = vmatprep.subr.bf16.mxu0 0
        %938 = vmatpush1.bf16.msra.mxu0 0
        %939 = vmatprep.subr.bf16.mxu0 0
        %940 = vmatpush1.bf16.msra.mxu0 0
        %941 = vmatprep.subr.bf16.mxu0 0
        %942 = vmatpush1.bf16.msra.mxu0 0
        %943 = vmatprep.subr.bf16.mxu0 0
        %944 = vmatpush1.bf16.msra.mxu0 0
        %945 = vmatprep.subr.bf16.mxu0 0
        %946 = vmatpush1.bf16.msra.mxu0 0
        %947 = vmatprep.subr.bf16.mxu0 0
        %948 = vmatpush1.bf16.msra.mxu0 0
        %949 = vmatprep.subr.bf16.mxu0 0
        %950 = vmatpush1.bf16.msra.mxu0 0
        %951 = vmatprep.subr.bf16.mxu0 0
        %952 = vmatpush1.bf16.msra.mxu0 0
        %953 = vmatprep.subr.bf16.mxu0 0
        %954 = vmatpush1.bf16.msra.mxu0 0
        %955 = vmatprep.subr.bf16.mxu0 0
        %956 = vmatpush1.bf16.msra.mxu0 0
        %957 = vmatprep.subr.bf16.mxu0 0
        %958 = vmatpush1.bf16.msra.mxu0 0
        %959 = vmatprep.subr.bf16.mxu0 0
        %960 = vmatpush1.bf16.msra.mxu0 0
        %961 = vmatprep.subr.bf16.mxu0 0
        %962 = vmatpush1.bf16.msra.mxu0 0
        %963 = vmatprep.mubr.bf16.mxu0 0
        %964 = vmatmul.mubr.bf16.gmra.mrb[0].mxu0 %v929
        %v965 = vpop.f32.mrb[0].mxu0
        %v966 = vadd.f32 0.0, %v965
        %v967 = vpop.f32.mrb[0].mxu0
        %v968 = vpop.f32.mrb[0].mxu0
        %v969 = vpop.f32.mrb[0].mxu0
        %970 = vdwg.mxu0
        %v971 = vpack.c.bf16 %v966, %v966
        %972 = vrot.lane.b32.xlu0 %v752, 112
        %v973 = vpop.permute.xlu0 %972
        %974 = vrot.lane.b32.xlu0 %v753, 112
        %v975 = vpop.permute.xlu0 %974
        %v977 = vsel %vm754, %v973, 0
        %v980 = vsel %vm754, %v975, 0
        %982 = vmatprep.subr.bf16.mxu0 0
        %983 = vmatpush1.bf16.xpose.msra.mxu0 %v980
        %984 = vmatprep.subr.bf16.mxu0 0
        %985 = vmatpush1.bf16.xpose.msra.mxu0 0
        %986 = vmatprep.subr.bf16.mxu0 0
        %987 = vmatpush1.bf16.xpose.msra.mxu0 0
        %988 = vmatprep.subr.bf16.mxu0 0
        %989 = vmatpush1.bf16.xpose.msra.mxu0 0
        %990 = vmatprep.subr.bf16.mxu0 0
        %991 = vmatpush1.bf16.xpose.msra.mxu0 0
        %992 = vmatprep.subr.bf16.mxu0 0
        %993 = vmatpush1.bf16.xpose.msra.mxu0 0
        %994 = vmatprep.subr.bf16.mxu0 0
        %995 = vmatpush1.bf16.xpose.msra.mxu0 0
        %996 = vmatprep.subr.bf16.mxu0 0
        %997 = vmatpush1.bf16.xpose.msra.mxu0 0
        %998 = vmatprep.subr.bf16.mxu0 0
        %999 = vmatpush1.bf16.xpose.msra.mxu0 0
        %1000 = vmatprep.subr.bf16.mxu0 0
        %1001 = vmatpush1.bf16.xpose.msra.mxu0 0
        %1002 = vmatprep.subr.bf16.mxu0 0
        %1003 = vmatpush1.bf16.xpose.msra.mxu0 0
        %1004 = vmatprep.subr.bf16.mxu0 0
        %1005 = vmatpush1.bf16.xpose.msra.mxu0 0
        %1006 = vmatprep.subr.bf16.mxu0 0
        %1007 = vmatpush1.bf16.xpose.msra.mxu0 0
        %1008 = vmatprep.subr.bf16.mxu0 0
        %1009 = vmatpush1.bf16.xpose.msra.mxu0 0
        %1010 = vmatprep.subr.bf16.mxu0 0
        %1011 = vmatpush1.bf16.xpose.msra.mxu0 0
        %1012 = vmatprep.subr.bf16.mxu0 0
        %1013 = vmatpush1.bf16.xpose.msra.mxu0 0
        %1014 = vmatprep.mubr.bf16.mxu0 0
        %1015 = vmatmul.mubr.bf16.gmra.mrb[0].mxu0 %v977
        %v1016 = vpop.f32.mrb[0].mxu0
        %v1017 = vadd.f32 0.0, %v1016
        %v1018 = vpop.f32.mrb[0].mxu0
        %v1019 = vpop.f32.mrb[0].mxu0
        %v1020 = vpop.f32.mrb[0].mxu0
        %1021 = vdwg.mxu0
        %v1022 = vsel %vm801, %v1017, -inf
        %1023 = vmax.xlane.f32.xlu0 %v1022
        %v1024 = vpop.xlane.xlu0 %1023
        %v1025 = vsub.f32 %v1017, %v1024
        %v1026 = vmul.f32 %v1025, 1.442695
        %v1027 = vpow.pop %v1026
        %v1028 = vsel %vm801, %v1027, 0.0
        %1029 = vadd.xlane.f32.xlu0 %v1028
        %v1030 = vpop.xlane.xlu0 %1029
        %v1031 = vrcp.pop %v1030
        %v1032 = vmul.f32 %v1027, %v1031
        %v1033 = vpack.c.bf16 %v1032, %v1032
        %1034 = vrot.lane.b32.xlu0 %v753, 80
        %v1035 = vpop.permute.xlu0 %1034
        %v1038 = vsel %vm801, %v1033, 0
        %1040 = vmatprep.subr.bf16.mxu0 0
        %1041 = vmatpush1.bf16.msra.mxu0 %v1035
        %1042 = vmatprep.subr.bf16.mxu0 0
        %1043 = vmatpush1.bf16.msra.mxu0 0
        %1044 = vmatprep.subr.bf16.mxu0 0
        %1045 = vmatpush1.bf16.msra.mxu0 0
        %1046 = vmatprep.subr.bf16.mxu0 0
        %1047 = vmatpush1.bf16.msra.mxu0 0
        %1048 = vmatprep.subr.bf16.mxu0 0
        %1049 = vmatpush1.bf16.msra.mxu0 0
        %1050 = vmatprep.subr.bf16.mxu0 0
        %1051 = vmatpush1.bf16.msra.mxu0 0
        %1052 = vmatprep.subr.bf16.mxu0 0
        %1053 = vmatpush1.bf16.msra.mxu0 0
        %1054 = vmatprep.subr.bf16.mxu0 0
        %1055 = vmatpush1.bf16.msra.mxu0 0
        %1056 = vmatprep.subr.bf16.mxu0 0
        %1057 = vmatpush1.bf16.msra.mxu0 0
        %1058 = vmatprep.subr.bf16.mxu0 0
        %1059 = vmatpush1.bf16.msra.mxu0 0
        %1060 = vmatprep.subr.bf16.mxu0 0
        %1061 = vmatpush1.bf16.msra.mxu0 0
        %1062 = vmatprep.subr.bf16.mxu0 0
        %1063 = vmatpush1.bf16.msra.mxu0 0
        %1064 = vmatprep.subr.bf16.mxu0 0
        %1065 = vmatpush1.bf16.msra.mxu0 0
        %1066 = vmatprep.subr.bf16.mxu0 0
        %1067 = vmatpush1.bf16.msra.mxu0 0
        %1068 = vmatprep.subr.bf16.mxu0 0
        %1069 = vmatpush1.bf16.msra.mxu0 0
        %1070 = vmatprep.subr.bf16.mxu0 0
        %1071 = vmatpush1.bf16.msra.mxu0 0
        %1072 = vmatprep.mubr.bf16.mxu0 0
        %1073 = vmatmul.mubr.bf16.gmra.mrb[0].mxu0 %v1038
        %v1074 = vpop.f32.mrb[0].mxu0
        %v1075 = vadd.f32 0.0, %v1074
        %v1076 = vpop.f32.mrb[0].mxu0
        %v1077 = vpop.f32.mrb[0].mxu0
        %v1078 = vpop.f32.mrb[0].mxu0
        %1079 = vdwg.mxu0
        %v1080 = vpack.c.bf16 %v1075, %v1075
        %1081 = vrot.lane.b32.xlu0 %v752, 104
        %v1082 = vpop.permute.xlu0 %1081
        %1083 = vrot.lane.b32.xlu0 %v753, 104
        %v1084 = vpop.permute.xlu0 %1083
        %v1086 = vsel %vm754, %v1082, 0
        %v1089 = vsel %vm754, %v1084, 0
        %1091 = vmatprep.subr.bf16.mxu0 0
        %1092 = vmatpush1.bf16.xpose.msra.mxu0 %v1089
        %1093 = vmatprep.subr.bf16.mxu0 0
        %1094 = vmatpush1.bf16.xpose.msra.mxu0 0
        %1095 = vmatprep.subr.bf16.mxu0 0
        %1096 = vmatpush1.bf16.xpose.msra.mxu0 0
        %1097 = vmatprep.subr.bf16.mxu0 0
        %1098 = vmatpush1.bf16.xpose.msra.mxu0 0
        %1099 = vmatprep.subr.bf16.mxu0 0
        %1100 = vmatpush1.bf16.xpose.msra.mxu0 0
        %1101 = vmatprep.subr.bf16.mxu0 0
        %1102 = vmatpush1.bf16.xpose.msra.mxu0 0
        %1103 = vmatprep.subr.bf16.mxu0 0
        %1104 = vmatpush1.bf16.xpose.msra.mxu0 0
        %1105 = vmatprep.subr.bf16.mxu0 0
        %1106 = vmatpush1.bf16.xpose.msra.mxu0 0
        %1107 = vmatprep.subr.bf16.mxu0 0
        %1108 = vmatpush1.bf16.xpose.msra.mxu0 0
        %1109 = vmatprep.subr.bf16.mxu0 0
        %1110 = vmatpush1.bf16.xpose.msra.mxu0 0
        %1111 = vmatprep.subr.bf16.mxu0 0
        %1112 = vmatpush1.bf16.xpose.msra.mxu0 0
        %1113 = vmatprep.subr.bf16.mxu0 0
        %1114 = vmatpush1.bf16.xpose.msra.mxu0 0
        %1115 = vmatprep.subr.bf16.mxu0 0
        %1116 = vmatpush1.bf16.xpose.msra.mxu0 0
        %1117 = vmatprep.subr.bf16.mxu0 0
        %1118 = vmatpush1.bf16.xpose.msra.mxu0 0
        %1119 = vmatprep.subr.bf16.mxu0 0
        %1120 = vmatpush1.bf16.xpose.msra.mxu0 0
        %1121 = vmatprep.subr.bf16.mxu0 0
        %1122 = vmatpush1.bf16.xpose.msra.mxu0 0
        %1123 = vmatprep.mubr.bf16.mxu0 0
        %1124 = vmatmul.mubr.bf16.gmra.mrb[0].mxu0 %v1086
        %v1125 = vpop.f32.mrb[0].mxu0
        %v1126 = vadd.f32 0.0, %v1125
        %v1127 = vpop.f32.mrb[0].mxu0
        %v1128 = vpop.f32.mrb[0].mxu0
        %v1129 = vpop.f32.mrb[0].mxu0
        %1130 = vdwg.mxu0
        %v1131 = vsel %vm801, %v1126, -inf
        %1132 = vmax.xlane.f32.xlu0 %v1131
        %v1133 = vpop.xlane.xlu0 %1132
        %v1134 = vsub.f32 %v1126, %v1133
        %v1135 = vmul.f32 %v1134, 1.442695
        %v1136 = vpow.pop %v1135
        %v1137 = vsel %vm801, %v1136, 0.0
        %1138 = vadd.xlane.f32.xlu0 %v1137
        %v1139 = vpop.xlane.xlu0 %1138
        %v1140 = vrcp.pop %v1139
        %v1141 = vmul.f32 %v1136, %v1140
        %v1142 = vpack.c.bf16 %v1141, %v1141
        %1143 = vrot.lane.b32.xlu0 %v753, 72
        %v1144 = vpop.permute.xlu0 %1143
        %v1147 = vsel %vm801, %v1142, 0
        %1149 = vmatprep.subr.bf16.mxu0 0
        %1150 = vmatpush1.bf16.msra.mxu0 %v1144
        %1151 = vmatprep.subr.bf16.mxu0 0
        %1152 = vmatpush1.bf16.msra.mxu0 0
        %1153 = vmatprep.subr.bf16.mxu0 0
        %1154 = vmatpush1.bf16.msra.mxu0 0
        %1155 = vmatprep.subr.bf16.mxu0 0
        %1156 = vmatpush1.bf16.msra.mxu0 0
        %1157 = vmatprep.subr.bf16.mxu0 0
        %1158 = vmatpush1.bf16.msra.mxu0 0
        %1159 = vmatprep.subr.bf16.mxu0 0
        %1160 = vmatpush1.bf16.msra.mxu0 0
        %1161 = vmatprep.subr.bf16.mxu0 0
        %1162 = vmatpush1.bf16.msra.mxu0 0
        %1163 = vmatprep.subr.bf16.mxu0 0
        %1164 = vmatpush1.bf16.msra.mxu0 0
        %1165 = vmatprep.subr.bf16.mxu0 0
        %1166 = vmatpush1.bf16.msra.mxu0 0
        %1167 = vmatprep.subr.bf16.mxu0 0
        %1168 = vmatpush1.bf16.msra.mxu0 0
        %1169 = vmatprep.subr.bf16.mxu0 0
        %1170 = vmatpush1.bf16.msra.mxu0 0
        %1171 = vmatprep.subr.bf16.mxu0 0
        %1172 = vmatpush1.bf16.msra.mxu0 0
        %1173 = vmatprep.subr.bf16.mxu0 0
        %1174 = vmatpush1.bf16.msra.mxu0 0
        %1175 = vmatprep.subr.bf16.mxu0 0
        %1176 = vmatpush1.bf16.msra.mxu0 0
        %1177 = vmatprep.subr.bf16.mxu0 0
        %1178 = vmatpush1.bf16.msra.mxu0 0
        %1179 = vmatprep.subr.bf16.mxu0 0
        %1180 = vmatpush1.bf16.msra.mxu0 0
        %1181 = vmatprep.mubr.bf16.mxu0 0
        %1182 = vmatmul.mubr.bf16.gmra.mrb[0].mxu0 %v1147
        %v1183 = vpop.f32.mrb[0].mxu0
        %v1184 = vadd.f32 0.0, %v1183
        %v1185 = vpop.f32.mrb[0].mxu0
        %v1186 = vpop.f32.mrb[0].mxu0
        %v1187 = vpop.f32.mrb[0].mxu0
        %1188 = vdwg.mxu0
        %v1189 = vpack.c.bf16 %v1184, %v1184
        %1191 = vrot.lane.b32.xlu0 %v971, 8
        %v1192 = vpop.permute.xlu0 %1191
        %1194 = vrot.lane.b32.xlu0 %v1080, 16
        %v1195 = vpop.permute.xlu0 %1194
        %1197 = vrot.lane.b32.xlu0 %v1189, 24
        %v1198 = vpop.permute.xlu0 %1197
        %v1201 = vsel %vm754, %v861, %v1192
        %v1203 = vsel %vm801, %v1201, %v1195
        %vm1204 = vcmask 195584
        %v1206 = vsel %vm1204, %v1203, %v1198
        %v1207 = vld [vmem:[%s6] sm:$0xf]
        %v1208 = vld [vmem:[%s6 + $0x4] sm:$0xf]
        %v1209 = vld [vmem:[%s6 + $0x8] sm:$0xf]
        %v1210 = vld [vmem:[%s6 + $0xc] sm:$0xf]
        %v1211 = vld [vmem:[#allocation3] sm:$0x1]
        %v1213 = vlaneseq
        %v1214 = vshrl.u32 %v1213, 7
        %v1215 = vsub.s32 0, %v1214
        %v1216 = vrot.slane %v1211, %v1215
        %v1222 = vunpack.c.l.b16 %v1207
        %v1223 = vunpack.c.l.b16 %v1208
        %v1224 = vunpack.c.l.b16 %v1209
        %v1225 = vunpack.c.l.b16 %v1210
        %v1226 = vpack.c.b16 %v1223, %v1222
        %v1227 = vpack.c.b16 %v1225, %v1224
        %v1230 = vsel %vm708, %v1206, 0
        %1232 = vmatprep.subr.bf16.mxu0 0
        %1233 = vmatpush1.bf16.msra.mxu0 %v1226
        %1234 = vmatprep.subr.bf16.mxu0 0
        %1235 = vmatpush1.bf16.msra.mxu0 %v1227
        %1236 = vmatprep.subr.bf16.mxu0 0
        %1237 = vmatpush1.bf16.msra.mxu0 0
        %1238 = vmatprep.subr.bf16.mxu0 0
        %1239 = vmatpush1.bf16.msra.mxu0 0
        %1240 = vmatprep.subr.bf16.mxu0 0
        %1241 = vmatpush1.bf16.msra.mxu0 0
        %1242 = vmatprep.subr.bf16.mxu0 0
        %1243 = vmatpush1.bf16.msra.mxu0 0
        %1244 = vmatprep.subr.bf16.mxu0 0
        %1245 = vmatpush1.bf16.msra.mxu0 0
        %1246 = vmatprep.subr.bf16.mxu0 0
        %1247 = vmatpush1.bf16.msra.mxu0 0
        %1248 = vmatprep.subr.bf16.mxu0 0
        %1249 = vmatpush1.bf16.msra.mxu0 0
        %1250 = vmatprep.subr.bf16.mxu0 0
        %1251 = vmatpush1.bf16.msra.mxu0 0
        %1252 = vmatprep.subr.bf16.mxu0 0
        %1253 = vmatpush1.bf16.msra.mxu0 0
        %1254 = vmatprep.subr.bf16.mxu0 0
        %1255 = vmatpush1.bf16.msra.mxu0 0
        %1256 = vmatprep.subr.bf16.mxu0 0
        %1257 = vmatpush1.bf16.msra.mxu0 0
        %1258 = vmatprep.subr.bf16.mxu0 0
        %1259 = vmatpush1.bf16.msra.mxu0 0
        %1260 = vmatprep.subr.bf16.mxu0 0
        %1261 = vmatpush1.bf16.msra.mxu0 0
        %1262 = vmatprep.subr.bf16.mxu0 0
        %1263 = vmatpush1.bf16.msra.mxu0 0
        %1264 = vmatprep.mubr.bf16.mxu0 0
        %1265 = vmatmul.mubr.bf16.gmra.mrb[0].mxu0 %v1230
        %v1266 = vpop.f32.mrb[0].mxu0
        %v1267 = vadd.f32 %v1216, %v1266
        %v1268 = vpop.f32.mrb[0].mxu0
        %v1269 = vpop.f32.mrb[0].mxu0
        %v1270 = vpop.f32.mrb[0].mxu0
        %1271 = vdwg.mxu0
        %v1272 = vadd.f32 %v683, %v1267
        %v1273 = vld [vmem:[#allocation6] sm:$0x1]
        %v1274 = vld [vmem:[#allocation8] sm:$0x1]
        %v1275 = vsel %vm708, %v1272, 0.0
        %1276 = vadd.xlane.f32.xlu0 %v1275
        %v1277 = vpop.xlane.xlu0 %1276
        %v1278 = vrcp.pop 32.0
        %v1279 = vmul.f32 %v1277, %v1278
        %v1280 = vsub.f32 %v1272, %v1279
        %v1281 = vmul.f32 %v1280, %v1280
        %v1282 = vsel %vm708, %v1281, 0.0
        %1283 = vadd.xlane.f32.xlu0 %v1282
        %v1284 = vpop.xlane.xlu0 %1283
        %v1285 = vmul.f32 %v1284, %v1278
        %v1286 = vadd.f32 %v1285, 1e-05
        %v1287 = vrsqrt.pop %v1286
        %v1288 = vmul.f32 %v1280, %v1287
        %v1290 = vlaneseq
        %v1291 = vshrl.u32 %v1290, 7
        %v1292 = vsub.s32 0, %v1291
        %v1293 = vrot.slane %v1273, %v1292
        %v1295 = vmul.f32 %v1288, %v1293
        %v1297 = vlaneseq
        %v1298 = vshrl.u32 %v1297, 7
        %v1299 = vsub.s32 0, %v1298
        %v1300 = vrot.slane %v1274, %v1299
        %v1302 = vadd.f32 %v1295, %v1300
        %v1303 = vpack.c.bf16 %v1302, %v1302
        %v1304 = vld [vmem:[%s10] sm:$0xf]
        %v1305 = vld [vmem:[%s10 + $0x4] sm:$0xf]
        %v1306 = vld [vmem:[%s10 + $0x8] sm:$0xf]
        %v1307 = vld [vmem:[%s10 + $0xc] sm:$0xf]
        %v1308 = vld [vmem:[%s11] sm:$0x1]
        %v1310 = vlaneseq
        %v1311 = vshrl.u32 %v1310, 7
        %v1312 = vsub.s32 0, %v1311
        %v1313 = vrot.slane %v1308, %v1312
        %v1319 = vunpack.c.l.b16 %v1304
        %v1320 = vunpack.c.l.b16 %v1305
        %v1321 = vunpack.c.l.b16 %v1306
        %v1322 = vunpack.c.l.b16 %v1307
        %v1323 = vpack.c.b16 %v1320, %v1319
        %v1324 = vpack.c.b16 %v1322, %v1321
        %v1328 = vsel %vm708, %v1303, 0
        %1330 = vmatprep.subr.bf16.mxu0 0
        %1331 = vmatpush1.bf16.msra.mxu0 %v1323
        %1332 = vmatprep.subr.bf16.mxu0 0
        %1333 = vmatpush1.bf16.msra.mxu0 %v1324
        %1334 = vmatprep.subr.bf16.mxu0 0
        %1335 = vmatpush1.bf16.msra.mxu0 0
        %1336 = vmatprep.subr.bf16.mxu0 0
        %1337 = vmatpush1.bf16.msra.mxu0 0
        %1338 = vmatprep.subr.bf16.mxu0 0
        %1339 = vmatpush1.bf16.msra.mxu0 0
        %1340 = vmatprep.subr.bf16.mxu0 0
        %1341 = vmatpush1.bf16.msra.mxu0 0
        %1342 = vmatprep.subr.bf16.mxu0 0
        %1343 = vmatpush1.bf16.msra.mxu0 0
        %1344 = vmatprep.subr.bf16.mxu0 0
        %1345 = vmatpush1.bf16.msra.mxu0 0
        %1346 = vmatprep.subr.bf16.mxu0 0
        %1347 = vmatpush1.bf16.msra.mxu0 0
        %1348 = vmatprep.subr.bf16.mxu0 0
        %1349 = vmatpush1.bf16.msra.mxu0 0
        %1350 = vmatprep.subr.bf16.mxu0 0
        %1351 = vmatpush1.bf16.msra.mxu0 0
        %1352 = vmatprep.subr.bf16.mxu0 0
        %1353 = vmatpush1.bf16.msra.mxu0 0
        %1354 = vmatprep.subr.bf16.mxu0 0
        %1355 = vmatpush1.bf16.msra.mxu0 0
        %1356 = vmatprep.subr.bf16.mxu0 0
        %1357 = vmatpush1.bf16.msra.mxu0 0
        %1358 = vmatprep.subr.bf16.mxu0 0
        %1359 = vmatpush1.bf16.msra.mxu0 0
        %1360 = vmatprep.subr.bf16.mxu0 0
        %1361 = vmatpush1.bf16.msra.mxu0 0
        %1362 = vmatprep.mubr.bf16.mxu0 0
        %1363 = vmatmul.mubr.bf16.gmra.mrb[0].mxu0 %v1328
        %v1364 = vpop.f32.mrb[0].mxu0
        %v1365 = vadd.f32 %v1313, %v1364
        %v1366 = vpop.f32.mrb[0].mxu0
        %v1367 = vpop.f32.mrb[0].mxu0
        %v1368 = vpop.f32.mrb[0].mxu0
        %1369 = vdwg.mxu0
        %v1370 = vmax.f32 %v1365, 0.0
        %v1371 = vpack.c.bf16 %v1370, %v1370
        %v1372 = vld [vmem:[%s12] sm:$0xf]
        %v1373 = vld [vmem:[%s12 + $0x4] sm:$0xf]
        %v1374 = vld [vmem:[%s12 + $0x8] sm:$0xf]
        %v1375 = vld [vmem:[%s12 + $0xc] sm:$0xf]
        %v1376 = vld [vmem:[%s12 + $0x10] sm:$0xf]
        %v1377 = vld [vmem:[%s12 + $0x14] sm:$0xf]
        %v1378 = vld [vmem:[%s12 + $0x18] sm:$0xf]
        %v1379 = vld [vmem:[%s12 + $0x1c] sm:$0xf]
        %v1380 = vld [vmem:[%s12 + $0x20] sm:$0xf]
        %v1381 = vld [vmem:[%s12 + $0x24] sm:$0xf]
        %v1382 = vld [vmem:[%s12 + $0x28] sm:$0xf]
        %v1383 = vld [vmem:[%s12 + $0x2c] sm:$0xf]
        %v1384 = vld [vmem:[%s12 + $0x30] sm:$0xf]
        %v1385 = vld [vmem:[%s12 + $0x34] sm:$0xf]
        %v1386 = vld [vmem:[%s12 + $0x38] sm:$0xf]
        %v1387 = vld [vmem:[%s12 + $0x3c] sm:$0xf]
        %v1388 = vld [vmem:[%s13] sm:$0x1]
        %v1390 = vlaneseq
        %v1391 = vshrl.u32 %v1390, 7
        %v1392 = vsub.s32 0, %v1391
        %v1393 = vrot.slane %v1388, %v1392
        %v1411 = vunpack.c.l.b16 %v1372
        %v1412 = vunpack.c.l.b16 %v1373
        %v1413 = vunpack.c.l.b16 %v1374
        %v1414 = vunpack.c.l.b16 %v1375
        %v1415 = vunpack.c.l.b16 %v1376
        %v1416 = vunpack.c.l.b16 %v1377
        %v1417 = vunpack.c.l.b16 %v1378
        %v1418 = vunpack.c.l.b16 %v1379
        %v1419 = vunpack.c.l.b16 %v1380
        %v1420 = vunpack.c.l.b16 %v1381
        %v1421 = vunpack.c.l.b16 %v1382
        %v1422 = vunpack.c.l.b16 %v1383
        %v1423 = vunpack.c.l.b16 %v1384
        %v1424 = vunpack.c.l.b16 %v1385
        %v1425 = vunpack.c.l.b16 %v1386
        %v1426 = vunpack.c.l.b16 %v1387
        %v1427 = vpack.c.b16 %v1412, %v1411
        %v1428 = vpack.c.b16 %v1414, %v1413
        %v1429 = vpack.c.b16 %v1416, %v1415
        %v1430 = vpack.c.b16 %v1418, %v1417
        %v1431 = vpack.c.b16 %v1420, %v1419
        %v1432 = vpack.c.b16 %v1422, %v1421
        %v1433 = vpack.c.b16 %v1424, %v1423
        %v1434 = vpack.c.b16 %v1426, %v1425
        %1443 = vmatprep.subr.bf16.mxu0 0
        %1444 = vmatpush1.bf16.msra.mxu0 %v1427
        %1445 = vmatprep.subr.bf16.mxu0 0
        %1446 = vmatpush1.bf16.msra.mxu0 %v1428
        %1447 = vmatprep.subr.bf16.mxu0 0
        %1448 = vmatpush1.bf16.msra.mxu0 %v1429
        %1449 = vmatprep.subr.bf16.mxu0 0
        %1450 = vmatpush1.bf16.msra.mxu0 %v1430
        %1451 = vmatprep.subr.bf16.mxu0 0
        %1452 = vmatpush1.bf16.msra.mxu0 %v1431
        %1453 = vmatprep.subr.bf16.mxu0 0
        %1454 = vmatpush1.bf16.msra.mxu0 %v1432
        %1455 = vmatprep.subr.bf16.mxu0 0
        %1456 = vmatpush1.bf16.msra.mxu0 %v1433
        %1457 = vmatprep.subr.bf16.mxu0 0
        %1458 = vmatpush1.bf16.msra.mxu0 %v1434
        %1459 = vmatprep.subr.bf16.mxu0 0
        %1460 = vmatpush1.bf16.msra.mxu0 0
        %1461 = vmatprep.subr.bf16.mxu0 0
        %1462 = vmatpush1.bf16.msra.mxu0 0
        %1463 = vmatprep.subr.bf16.mxu0 0
        %1464 = vmatpush1.bf16.msra.mxu0 0
        %1465 = vmatprep.subr.bf16.mxu0 0
        %1466 = vmatpush1.bf16.msra.mxu0 0
        %1467 = vmatprep.subr.bf16.mxu0 0
        %1468 = vmatpush1.bf16.msra.mxu0 0
        %1469 = vmatprep.subr.bf16.mxu0 0
        %1470 = vmatpush1.bf16.msra.mxu0 0
        %1471 = vmatprep.subr.bf16.mxu0 0
        %1472 = vmatpush1.bf16.msra.mxu0 0
        %1473 = vmatprep.subr.bf16.mxu0 0
        %1474 = vmatpush1.bf16.msra.mxu0 0
        %1475 = vmatprep.mubr.bf16.mxu0 0
        %1476 = vmatmul.mubr.bf16.gmra.mrb[0].mxu0 %v1371
        %v1477 = vpop.f32.mrb[0].mxu0
        %v1478 = vadd.f32 %v1393, %v1477
        %v1479 = vpop.f32.mrb[0].mxu0
        %v1480 = vpop.f32.mrb[0].mxu0
        %v1481 = vpop.f32.mrb[0].mxu0
        %1482 = vdwg.mxu0
        %v1483 = vadd.f32 %v1302, %v1478
        %v1484 = vld [vmem:[%s14] sm:$0x1]
        %v1485 = vld [vmem:[%s15] sm:$0x1]
        %v1486 = vsel %vm708, %v1483, 0.0
        %1487 = vadd.xlane.f32.xlu0 %v1486
        %v1488 = vpop.xlane.xlu0 %1487
        %v1489 = vmul.f32 %v1488, %v1278
        %v1490 = vsub.f32 %v1483, %v1489
        %v1491 = vmul.f32 %v1490, %v1490
        %v1492 = vsel %vm708, %v1491, 0.0
        %1493 = vadd.xlane.f32.xlu0 %v1492
        %v1494 = vpop.xlane.xlu0 %1493
        %v1495 = vmul.f32 %v1494, %v1278
        %v1496 = vadd.f32 %v1495, 1e-05
        %v1497 = vrsqrt.pop %v1496
        %v1498 = vmul.f32 %v1490, %v1497
        %v1500 = vlaneseq
        %v1501 = vshrl.u32 %v1500, 7
        %v1502 = vsub.s32 0, %v1501
        %v1503 = vrot.slane %v1484, %v1502
        %v1505 = vmul.f32 %v1498, %v1503
        %v1507 = vlaneseq
        %v1508 = vshrl.u32 %v1507, 7
        %v1509 = vsub.s32 0, %v1508
        %v1510 = vrot.slane %v1485, %v1509
        %v1512 = vadd.f32 %v1505, %v1510
        %1513 = vst.msk [vmem:[%s587] sm:$0xff] %vm708, %v1512
        %s1514 = sand.u32 %s402, 1
        %s1515 = scalar_lea.sflag [#allocation5], %s1514
        %s1516 = sand.u32 %s402, 1
        %s1517 = smul.addr %s1516, 8
        %s1518 = scalar_lea.vmem [#allocation9], %s1517
        // Predicated region
        $region101: #{tpu_custom_call.1} parent=83 // pred_check
          %p1519 = pneg %p412
        $region102: #{tpu_custom_call.1} parent=83 // pred_check_branch
          %1521 = sbr.rel (%p1519) target = $region104
        $region103: #{tpu_custom_call.1} parent=83 // pred_region
          %s1523 = ssub.s32 128, 128
          %1524 = vsyncadd %s1515, %s1523
          %s1525 = sadd.s32 %s37, %s36
          %s1526 = smul.addr %s1525, 128
          %s1527 = scalar_lea.hbm %s16, %s1526
          %s1529 = sshll.u32 %s1518, 4
          %s1530 = int_to_ptr.vmem [resolvable:$true] %s1529
          %1532 = dma.vmem_to_hbm [thread:$0]  %s1530, 128, %s1527, %s1515
        $region104: #{tpu_custom_call.1} parent=83 // pred_fallthru
          _
      $region84: #{tpu_custom_call.1} parent=5 // pred_fallthru
        _
      %p1533 = scmp.le.s32.totalorder 2, %s27
      // Predicated region
      $region105: #{tpu_custom_call.1} parent=5 // pred_check
        %p1534 = pneg %p1533
      $region106: #{tpu_custom_call.1} parent=5 // pred_check_branch
        %1536 = sbr.rel (%p1534) target = $region108
      $region107: #{tpu_custom_call.1} parent=5 // pred_region
        %s1537 = ssub.s32 %s27, 2
        // Predicated region
        $region109: #{tpu_custom_call.1} parent=107 // pred_check
          %p1538 = pneg %p418
        $region110: #{tpu_custom_call.1} parent=107 // pred_check_branch
          %1540 = sbr.rel (%p1538) target = $region112
        $region111: #{tpu_custom_call.1} parent=107 // pred_region
          %s1541 = sand.u32 %s403, 1
          %s1542 = scalar_lea.sflag [#allocation5], %s1541
          %s1543 = sand.u32 %s403, 1
          %s1544 = smul.addr %s1543, 8
          %s1545 = scalar_lea.vmem [#allocation9], %s1544
          %1546 = dma.done %s1542, 128
        $region112: #{tpu_custom_call.1} parent=107 // pred_fallthru
          _
      $region108: #{tpu_custom_call.1} parent=5 // pred_fallthru
        _
    $region6: #{tpu_custom_call.1} parent=1 // loop_footer
      %s31 = sadd.s32 1, %s27
    $region7: #{tpu_custom_call.1} parent=1 // loop_footer_branch
      %26 = sbr.rel target = $region3
    $region8: #{tpu_custom_call.1} parent=1 // loop_exit
      _
    %1547 = vsyncpa [#allocation4], 1
    %s1548 = scalar_lea.sflag [#allocation4], 1
    %1549 = vsyncpa %s1548, 1
    %1550 = vsyncpa [#allocation7], 1
    %1551 = vsyncpa [#allocation5], 1
    %s1552 = scalar_lea.sflag [#allocation5], 1
    %1553 = vsyncpa %s1552, 1

</llo_original>
